<compile_context>
chip_gen: v7x
topology: tpu7x:2x2x1
jax: 0.10.0
libtpu: 0.0.40
codegen_flags: <defaults>
</compile_context>

<pallas_src>
import functools

import jax
import jax.numpy as jnp
from jax import lax
from jax.experimental import pallas as pl
from jax.experimental.pallas import tpu as pltpu


KSIZE = 7
PAD = KSIZE // 2          # 3
LANE = 128


# ---------------------------------------------------------------------------
# TPU generation detection / VMEM budgeting
# ---------------------------------------------------------------------------
def _tpu_traits():
    kind = ""
    try:
        kind = jax.devices()[0].device_kind.lower()
    except Exception:
        pass
    cap = None
    try:
        info = pltpu.get_tpu_info()
        for attr in ("vmem_capacity_bytes", "vmem_size_bytes", "vmem_bytes"):
            v = getattr(info, attr, None)
            if v:
                cap = int(v)
                break
    except Exception:
        pass
    is_v7 = ("v7" in kind) or ("7x" in kind)
    is_v5e = ("v5e" in kind) or ("v5 lite" in kind) or ("v5litepod" in kind)
    if is_v7:
        cap = (64 << 20) if cap is None else min(cap, 64 << 20)
    if cap is None:
        cap = (128 << 20) if any(g in kind for g in ("v4", "v5", "v6")) else (64 << 20)
    two_tc = is_v7 or cap <= (64 << 20)
    # ~46 MiB tile budget on 64 MiB chips (v7x), ~92 MiB on 128 MiB chips.
    budget = max(24 << 20, min(int(0.72 * cap), cap - (16 << 20)))
    return {
        "kind": kind,
        "vmem_capacity": cap,
        "budget": budget,
        "two_tc": two_tc,
        "is_v5e": is_v5e,
        "limit_cap": cap - (8 << 20),
    }


def _vmem_limit_bytes(est_bytes, traits):
    # Derive the scoped-VMEM limit from the actual footprint of the chosen
    # tiles (+ slack), capped below physical capacity.
    return int(min(traits["limit_cap"], max(int(est_bytes) + (16 << 20), 48 << 20)))


def _largest_divisor_leq(n, cap):
    cap = int(max(1, min(cap, n)))
    for d in range(cap, 0, -1):
        if n % d == 0:
            return d
    return 1


def _pick_channel_block(C, max_ct):
    """Largest channel block that divides C, fits max_ct and keeps the
    (sublane, lane) BlockSpec constraint (multiple of 8, or the full axis)."""
    if max_ct >= C:
        return C
    best = 0
    for d in range(8, min(C, int(max_ct)) + 1, 8):
        if C % d == 0:
            best = d
    if best:
        return best
    # TODO(synk): no multiple-of-8 divisor of C fits the budget; fall back to
    # the full channel axis and rely on the raised vmem limit.
    return C


# ---------------------------------------------------------------------------
# Precomputed conv validity masks on the padded, flattened spatial axis
# ---------------------------------------------------------------------------
def _make_masks(H, W, HWp):
    k = jnp.arange(HWp, dtype=jnp.int32)
    row = k // W
    col = k % W
    valid = k < H * W
    row_masks, col_masks = [], []
    for d in range(KSIZE):
        off = d - PAD
        row_masks.append((valid & (row + off >= 0) & (row + off < H)).astype(jnp.float32))
        col_masks.append((valid & (col + off >= 0) & (col + off < W)).astype(jnp.float32))
    return jnp.stack(row_masks), jnp.stack(col_masks)       # (7, HWp) each


# ---------------------------------------------------------------------------
# Shared in-kernel 7x7 conv + sigmoid on the flattened spatial axis
# ---------------------------------------------------------------------------
def _conv7x7_sigmoid(max_pool, sum_pool, w_ref, b_ref, row_masks, col_masks, W):
    """sigmoid(Conv2d([max;mean], 7x7, pad=3)) on flattened (.., HWp) maps.

    w_ref[0:49] act on the channel-max map, w_ref[49:98] on the channel-sum
    map (1/C is folded into them host-side, so sum behaves as mean here).
    Zero padding is emulated with lane rolls + precomputed f32 masks; because
    the lane roll is linear, (channel, dy) sums are built first and only one
    roll + mask is applied per dx (12 row + 6 col rolls total).
    """
    HWp = max_pool.shape[-1]
    lane_axis = max_pool.ndim - 1
    pooled = (max_pool, sum_pool)            # channel order matches torch.cat((max, mean))

    acc_dx = [None] * KSIZE
    for dy in range(KSIZE):
        d_r = dy - PAD
        shifted = []
        for c in range(2):
            s = pooled[c]
            if d_r != 0:
                s = pltpu.roll(s, shift=(-d_r * W) % HWp, axis=lane_axis)
                s = s * row_masks[dy:dy + 1, :]
            shifted.append(s)
        for dx in range(KSIZE):
            term = (w_ref[dy * KSIZE + dx] * shifted[0]
                    + w_ref[KSIZE * KSIZE + dy * KSIZE + dx] * shifted[1])
            acc_dx[dx] = term if acc_dx[dx] is None else acc_dx[dx] + term

    acc = jnp.full(max_pool.shape, b_ref[0], dtype=jnp.float32)
    for dx in range(KSIZE):
        d_c = dx - PAD
        s = acc_dx[dx]
        if d_c != 0:
            s = pltpu.roll(s, shift=(-d_c) % HWp, axis=lane_axis)
            s = s * col_masks[dx:dx + 1, :]
        acc = acc + s
    return jax.nn.sigmoid(acc)


# ---------------------------------------------------------------------------
# Kernels
# ---------------------------------------------------------------------------
def _fused_kernel(w_ref, b_ref, x_ref, rm_ref, cm_ref, o_ref, *, W, compute_f32):
    # Single pass: pool + conv + sigmoid + multiply, all channels resident.
    x = x_ref[...]                                          # (bt, C, HWp)
    # Channel pools without a full-tile f32 copy of x: max in the input dtype,
    # sum with an f32 accumulator (1/C is folded into the conv weights).
    max_pool = jnp.max(x, axis=1).astype(jnp.float32)       # (bt, HWp)
    sum_pool = jnp.sum(x, axis=1, dtype=jnp.float32)        # (bt, HWp)
    attn = _conv7x7_sigmoid(max_pool, sum_pool, w_ref, b_ref,
                            rm_ref[...], cm_ref[...], W)    # (bt, HWp) f32
    if compute_f32 or x.dtype == jnp.float32:
        out = x.astype(jnp.float32) * attn[:, None, :]
    else:
        # bf16 elementwise path on chips with bf16 VALUs (v6e / v7x).
        out = x * attn.astype(x.dtype)[:, None, :]
    o_ref[...] = out.astype(o_ref.dtype)


def _attn_kernel(w_ref, b_ref, x_ref, rm_ref, cm_ref, attn_ref, max_sc, sum_sc, *, W):
    # Split-path kernel A: channel axis is a reduction grid axis with
    # resident max/sum accumulators; conv+sigmoid is done on the last step.
    ci = pl.program_id(1)

    @pl.when(ci == 0)
    def _():
        max_sc[...] = jnp.full_like(max_sc, -jnp.inf)
        sum_sc[...] = jnp.zeros_like(sum_sc)

    x = x_ref[...]                                          # (1, ct, HWp)
    max_sc[...] = jnp.maximum(max_sc[...],
                              jnp.max(x, axis=1).astype(jnp.float32))
    sum_sc[...] = sum_sc[...] + jnp.sum(x, axis=1, dtype=jnp.float32)

    @pl.when(ci == pl.num_programs(1) - 1)
    def _():
        attn = _conv7x7_sigmoid(max_sc[...], sum_sc[...], w_ref, b_ref,
                                rm_ref[...], cm_ref[...], W)     # (1, HWp) f32
        attn_ref[...] = attn[:, None, :]                         # (1, 1, HWp)


def _mul_kernel(x_ref, attn_ref, o_ref, *, compute_f32):
    # Split-path kernel B: lane-dense broadcast multiply.
    x = x_ref[...]                                          # (1, ct, HWp)
    a = attn_ref[...]                                       # (1, 1, HWp) f32
    if compute_f32 or x.dtype == jnp.float32:
        out = x.astype(jnp.float32) * a
    else:
        out = x * a.astype(x.dtype)
    o_ref[...] = out.astype(o_ref.dtype)


# ---------------------------------------------------------------------------
# Wrapper
# ---------------------------------------------------------------------------
def cbam_spatial(x, weight, bias, *, block_batch=None, force_split=False):
    """CBAM spatial attention forward.

    x: (B, C, H, W); weight: (1, 2, 7, 7) Conv2d(2,1,7,padding=3) weight;
    bias: (1,).  Returns sigmoid(conv(cat[max_c(x), mean_c(x)])) * x.
    """
    B, C, H, W = x.shape
    if H < PAD + 1 or W < PAD + 1:
        # TODO(synk): roll+mask conv scheme is only exercised for H, W >= 4.
        raise ValueError("cbam_spatial requires H >= 4 and W >= 4")
    HW = H * W
    HWp = ((HW + LANE - 1) // LANE) * LANE      # lane-dense flattened spatial axis

    traits = _tpu_traits()
    budget = traits["budget"]
    isz = x.dtype.itemsize
    compute_f32 = bool(traits["is_v5e"] and x.dtype != jnp.float32)   # no bf16 VALU on v5e
    csz = 4 if (compute_f32 or x.dtype == jnp.float32) else isz

    x_flat = x.reshape(B, C, HW)
    if HWp != HW:
        x_flat = jnp.pad(x_flat, ((0, 0), (0, 0), (0, HWp - HW)))

    # Conv params: f32; mean-channel weights pre-scaled by 1/C so the kernels
    # only need a channel sum.
    w = weight.astype(jnp.float32).reshape(2, KSIZE, KSIZE)
    w = w.at[1].multiply(1.0 / C)
    w_flat = w.reshape(-1)                                   # (98,)
    b_flat = bias.reshape(-1).astype(jnp.float32)            # (1,)
    row_masks, col_masks = _make_masks(H, W, HWp)

    # ---- fused single-pass feasibility (all channels resident per block) ----
    # per-batch-element footprint: in+out double-buffered + multiply
    # intermediates + possible f32 sum temp + small f32 conv temps.
    per_bt = C * HWp * (4 * isz + 2 * csz + (4 if isz < 4 else 0)) + 20 * HWp * 4
    fixed = 4 * KSIZE * HWp * 4                              # double-buffered masks
    bt_cap = (budget - fixed) // per_bt
    use_fused = (not force_split) and bt_cap >= 1
    if (use_fused and traits["two_tc"] and B == 1 and C >= 2
            and C * HWp * isz >= (1 << 20)):
        # On a 2-TC chip a 1-step grid idles a core; the split multiply kernel
        # gets a parallel channel axis instead.
        use_fused = False

    if use_fused:
        if block_batch is not None:
            bt = int(block_batch)
            if B % bt != 0:
                raise ValueError("block_batch must divide the batch size")
        else:
            bt_lim = bt_cap
            if traits["two_tc"] and B >= 2:
                bt_lim = min(bt_lim, B // 2)   # keep >= 2 parallel steps (v7x only)
            bt = _largest_divisor_leq(B, bt_lim)
        est = bt * per_bt + fixed
        cost = pl.CostEstimate(
            flops=int(B * HWp * 4 * KSIZE * KSIZE + 3 * B * C * HWp),
            transcendentals=int(B * HWp),
            bytes_accessed=int(2 * B * C * HWp * isz),
        )
        out_flat = pl.pallas_call(
            functools.partial(_fused_kernel, W=W, compute_f32=compute_f32),
            out_shape=jax.ShapeDtypeStruct((B, C, HWp), x.dtype),
            grid=(B // bt,),
            in_specs=[
                pl.BlockSpec(memory_space=pltpu.SMEM),               # conv weight (98,)
                pl.BlockSpec(memory_space=pltpu.SMEM),               # conv bias (1,)
                pl.BlockSpec((bt, C, HWp), lambda b: (b, 0, 0)),     # x block
                pl.BlockSpec((KSIZE, HWp), lambda b: (0, 0)),        # row masks
                pl.BlockSpec((KSIZE, HWp), lambda b: (0, 0)),        # col masks
            ],
            out_specs=pl.BlockSpec((bt, C, HWp), lambda b: (b, 0, 0)),
            compiler_params=pltpu.CompilerParams(
                dimension_semantics=("parallel",),
                vmem_limit_bytes=_vmem_limit_bytes(est, traits),
            ),
            cost_estimate=cost,
        )(w_flat, b_flat, x_flat, row_masks, col_masks)
    else:
        # ---- split path: (A) pool + conv + sigmoid, (B) x * attn ----
        # Kernel A: channel reduction grid axis, attn output resident per batch.
        per_ct_a = HWp * (2 * isz + (4 if isz < 4 else 0))
        fixed_a = fixed + HWp * 4 * 26          # attn out + scratch + conv temps
        ct_a = _pick_channel_block(C, max(1, (budget - fixed_a) // per_ct_a))
        est_a = fixed_a + ct_a * per_ct_a
        attn = pl.pallas_call(
            functools.partial(_attn_kernel, W=W),
            out_shape=jax.ShapeDtypeStruct((B, 1, HWp), jnp.float32),
            grid=(B, C // ct_a),
            in_specs=[
                pl.BlockSpec(memory_space=pltpu.SMEM),
                pl.BlockSpec(memory_space=pltpu.SMEM),
                pl.BlockSpec((1, ct_a, HWp), lambda b, c: (b, c, 0)),
                pl.BlockSpec((KSIZE, HWp), lambda b, c: (0, 0)),
                pl.BlockSpec((KSIZE, HWp), lambda b, c: (0, 0)),
            ],
            out_specs=pl.BlockSpec((1, 1, HWp), lambda b, c: (b, 0, 0)),
            scratch_shapes=[pltpu.VMEM((1, HWp), jnp.float32),
                            pltpu.VMEM((1, HWp), jnp.float32)],
            compiler_params=pltpu.CompilerParams(
                dimension_semantics=("parallel", "arbitrary"),
                vmem_limit_bytes=_vmem_limit_bytes(est_a, traits),
            ),
            cost_estimate=pl.CostEstimate(
                flops=int(B * HWp * 4 * KSIZE * KSIZE + 2 * B * C * HWp),
                transcendentals=int(B * HWp),
                bytes_accessed=int(B * C * HWp * isz + B * HWp * 4),
            ),
        )(w_flat, b_flat, x_flat, row_masks, col_masks)

        # Kernel B: fully parallel (batch, channel-block) multiply.
        per_ct_b = HWp * (4 * isz + 2 * csz)
        fixed_b = HWp * 4 * 16
        max_ct_b = max(1, (budget - fixed_b) // per_ct_b)
        if traits["two_tc"] and B == 1 and C >= 2:
            max_ct_b = min(max_ct_b, C // 2)    # give v7x's second core work
        ct_b = _pick_channel_block(C, max_ct_b)
        est_b = fixed_b + ct_b * per_ct_b
        out_flat = pl.pallas_call(
            functools.partial(_mul_kernel, compute_f32=compute_f32),
            out_shape=jax.ShapeDtypeStruct((B, C, HWp), x.dtype),
            grid=(B, C // ct_b),
            in_specs=[
                pl.BlockSpec((1, ct_b, HWp), lambda b, c: (b, c, 0)),
                pl.BlockSpec((1, 1, HWp), lambda b, c: (b, 0, 0)),
            ],
            out_specs=pl.BlockSpec((1, ct_b, HWp), lambda b, c: (b, c, 0)),
            compiler_params=pltpu.CompilerParams(
                dimension_semantics=("parallel", "parallel"),
                vmem_limit_bytes=_vmem_limit_bytes(est_b, traits),
            ),
            cost_estimate=pl.CostEstimate(
                flops=int(B * C * HWp),
                transcendentals=0,
                bytes_accessed=int(2 * B * C * HWp * isz + B * HWp * 4),
            ),
        )(x_flat, attn)

    if HWp != HW:
        out_flat = out_flat[:, :, :HW]
    return out_flat.reshape(B, C, H, W)


# ---------------------------------------------------------------------------
# Pure-JAX reference (matches the PyTorch forward)
# ---------------------------------------------------------------------------
def cbam_spatial_reference(x, weight, bias):
    max_pool = jnp.max(x, axis=1, keepdims=True)
    avg_pool = jnp.mean(x, axis=1, keepdims=True)
    cat = jnp.concatenate([max_pool, avg_pool], axis=1)      # (B,2,H,W)
    conv = lax.conv_general_dilated(
        cat, weight, window_strides=(1, 1), padding=((PAD, PAD), (PAD, PAD)),
        dimension_numbers=("NCHW", "OIHW", "NCHW"))
    conv = conv + bias.reshape(1, 1, 1, 1)
    return jax.nn.sigmoid(conv) * x


if __name__ == "__main__":
    key = jax.random.PRNGKey(0)
    kx, kw, kb, kx2 = jax.random.split(key, 4)

    B, C, H, W = 2, 4, 16, 16
    x = jax.random.normal(kx, (B, C, H, W), dtype=jnp.float32)

    # Deterministic Conv2d(2, 1, 7) params (kaiming-uniform-like bound).
    fan_in = 2 * KSIZE * KSIZE
    bound = 1.0 / (fan_in ** 0.5)
    weight = jax.random.uniform(kw, (1, 2, KSIZE, KSIZE), jnp.float32, -bound, bound)
    bias = jax.random.uniform(kb, (1,), jnp.float32, -bound, bound)

    ref = cbam_spatial_reference(x, weight, bias)

    # Fused single-pass path (channels fit in VMEM).
    out = jax.block_until_ready(cbam_spatial(x, weight, bias))
    assert out.shape == (B, C, H, W)
    assert jnp.allclose(out, ref, atol=1e-4, rtol=1e-4), "fused path mismatch"

    # Split (pool/conv kernel + multiply kernel) path, as used for large C*H*W.
    out_split = jax.block_until_ready(cbam_spatial(x, weight, bias, force_split=True))
    assert jnp.allclose(out_split, ref, atol=1e-4, rtol=1e-4), "split path mismatch"

    # Non-multiple-of-128 spatial size exercises lane padding + masks.
    B2, C2, H2, W2 = 2, 8, 12, 20           # H*W = 240 -> padded to 256 lanes
    x2 = jax.random.normal(kx2, (B2, C2, H2, W2), dtype=jnp.float32)
    out2 = jax.block_until_ready(cbam_spatial(x2, weight, bias))
    ref2 = cbam_spatial_reference(x2, weight, bias)
    assert jnp.allclose(out2, ref2, atol=1e-4, rtol=1e-4), "padded path mismatch"

    print("KERNEL_OK")
</pallas_src>

<mosaic_0001>
module attributes {stable_mosaic.version = 11 : i64} {
  func.func @_fused_kernel(%arg0: i32, %arg1: memref<98xf32, #tpu.memory_space<smem>>, %arg2: memref<1xf32, #tpu.memory_space<smem>>, %arg3: memref<1x4x256xf32, #tpu.memory_space<vmem>>, %arg4: memref<7x256xf32, #tpu.memory_space<vmem>>, %arg5: memref<7x256xf32, #tpu.memory_space<vmem>>, %arg6: memref<1x4x256xf32, #tpu.memory_space<vmem>>) attributes {dimension_semantics = [#tpu.dimension_semantics<parallel>], iteration_bounds = array<i64: 2>, scalar_prefetch = 0 : i64, scratch_operands = 0 : i64, tpu.core_type = #tpu.core_type<tc>, window_params = [{transform_indices = @transform_0, window_bounds = array<i64: 98>}, {transform_indices = @transform_1, window_bounds = array<i64: 1>}, {transform_indices = @transform_2, window_bounds = array<i64: 1, 4, 256>}, {pipeline_mode = #tpu.pipeline_mode<synchronous>, transform_indices = @transform_3, window_bounds = array<i64: 7, 256>}, {pipeline_mode = #tpu.pipeline_mode<synchronous>, transform_indices = @transform_4, window_bounds = array<i64: 7, 256>}, {transform_indices = @transform_5, window_bounds = array<i64: 1, 4, 256>}]} {
    %c0 = arith.constant 0 : index
    %c0_0 = arith.constant 0 : index
    %c0_1 = arith.constant 0 : index
    %0 = vector.load %arg3[%c0, %c0_0, %c0_1] : memref<1x4x256xf32, #tpu.memory_space<vmem>>, vector<1x4x256xf32>
    %cst = arith.constant dense<0xFF800000> : vector<1x256xf32>
    %1 = vector.multi_reduction <maximumf>, %0, %cst [1] : vector<1x4x256xf32> to vector<1x256xf32>
    %cst_2 = arith.constant dense<0.000000e+00> : vector<1x256xf32>
    %2 = vector.multi_reduction <add>, %0, %cst_2 [1] : vector<1x4x256xf32> to vector<1x256xf32>
    %c0_3 = arith.constant 0 : index
    %c0_4 = arith.constant 0 : index
    %3 = vector.load %arg4[%c0_3, %c0_4] : memref<7x256xf32, #tpu.memory_space<vmem>>, vector<7x256xf32>
    %c0_5 = arith.constant 0 : index
    %c0_6 = arith.constant 0 : index
    %4 = vector.load %arg5[%c0_5, %c0_6] : memref<7x256xf32, #tpu.memory_space<vmem>>, vector<7x256xf32>
    %c48_i32 = arith.constant 48 : i32
    %5 = tpu.dynamic_rotate %1 by %c48_i32 dim 1 : vector<1x256xf32>, i32 -> vector<1x256xf32>
    %6 = vector.extract_strided_slice %3 {offsets = [0, 0], sizes = [1, 256], strides = [1, 1]} : vector<7x256xf32> to vector<1x256xf32>
    %7 = arith.mulf %5, %6 : vector<1x256xf32>
    %c48_i32_7 = arith.constant 48 : i32
    %8 = tpu.dynamic_rotate %2 by %c48_i32_7 dim 1 : vector<1x256xf32>, i32 -> vector<1x256xf32>
    %9 = vector.extract_strided_slice %3 {offsets = [0, 0], sizes = [1, 256], strides = [1, 1]} : vector<7x256xf32> to vector<1x256xf32>
    %10 = arith.mulf %8, %9 : vector<1x256xf32>
    %c0_8 = arith.constant 0 : index
    %11 = memref.load %arg1[%c0_8] : memref<98xf32, #tpu.memory_space<smem>>
    %12 = vector.broadcast %11 : f32 to vector<1x256xf32>
    %13 = arith.mulf %12, %7 : vector<1x256xf32>
    %c49 = arith.constant 49 : index
    %14 = memref.load %arg1[%c49] : memref<98xf32, #tpu.memory_space<smem>>
    %15 = vector.broadcast %14 : f32 to vector<1x256xf32>
    %16 = arith.mulf %15, %10 : vector<1x256xf32>
    %17 = arith.addf %13, %16 : vector<1x256xf32>
    %c1 = arith.constant 1 : index
    %18 = memref.load %arg1[%c1] : memref<98xf32, #tpu.memory_space<smem>>
    %19 = vector.broadcast %18 : f32 to vector<1x256xf32>
    %20 = arith.mulf %19, %7 : vector<1x256xf32>
    %c50 = arith.constant 50 : index
    %21 = memref.load %arg1[%c50] : memref<98xf32, #tpu.memory_space<smem>>
    %22 = vector.broadcast %21 : f32 to vector<1x256xf32>
    %23 = arith.mulf %22, %10 : vector<1x256xf32>
    %24 = arith.addf %20, %23 : vector<1x256xf32>
    %c2 = arith.constant 2 : index
    %25 = memref.load %arg1[%c2] : memref<98xf32, #tpu.memory_space<smem>>
    %26 = vector.broadcast %25 : f32 to vector<1x256xf32>
    %27 = arith.mulf %26, %7 : vector<1x256xf32>
    %c51 = arith.constant 51 : index
    %28 = memref.load %arg1[%c51] : memref<98xf32, #tpu.memory_space<smem>>
    %29 = vector.broadcast %28 : f32 to vector<1x256xf32>
    %30 = arith.mulf %29, %10 : vector<1x256xf32>
    %31 = arith.addf %27, %30 : vector<1x256xf32>
    %c3 = arith.constant 3 : index
    %32 = memref.load %arg1[%c3] : memref<98xf32, #tpu.memory_space<smem>>
    %33 = vector.broadcast %32 : f32 to vector<1x256xf32>
    %34 = arith.mulf %33, %7 : vector<1x256xf32>
    %c52 = arith.constant 52 : index
    %35 = memref.load %arg1[%c52] : memref<98xf32, #tpu.memory_space<smem>>
    %36 = vector.broadcast %35 : f32 to vector<1x256xf32>
    %37 = arith.mulf %36, %10 : vector<1x256xf32>
    %38 = arith.addf %34, %37 : vector<1x256xf32>
    %c4 = arith.constant 4 : index
    %39 = memref.load %arg1[%c4] : memref<98xf32, #tpu.memory_space<smem>>
    %40 = vector.broadcast %39 : f32 to vector<1x256xf32>
    %41 = arith.mulf %40, %7 : vector<1x256xf32>
    %c53 = arith.constant 53 : index
    %42 = memref.load %arg1[%c53] : memref<98xf32, #tpu.memory_space<smem>>
    %43 = vector.broadcast %42 : f32 to vector<1x256xf32>
    %44 = arith.mulf %43, %10 : vector<1x256xf32>
    %45 = arith.addf %41, %44 : vector<1x256xf32>
    %c5 = arith.constant 5 : index
    %46 = memref.load %arg1[%c5] : memref<98xf32, #tpu.memory_space<smem>>
    %47 = vector.broadcast %46 : f32 to vector<1x256xf32>
    %48 = arith.mulf %47, %7 : vector<1x256xf32>
    %c54 = arith.constant 54 : index
    %49 = memref.load %arg1[%c54] : memref<98xf32, #tpu.memory_space<smem>>
    %50 = vector.broadcast %49 : f32 to vector<1x256xf32>
    %51 = arith.mulf %50, %10 : vector<1x256xf32>
    %52 = arith.addf %48, %51 : vector<1x256xf32>
    %c6 = arith.constant 6 : index
    %53 = memref.load %arg1[%c6] : memref<98xf32, #tpu.memory_space<smem>>
    %54 = vector.broadcast %53 : f32 to vector<1x256xf32>
    %55 = arith.mulf %54, %7 : vector<1x256xf32>
    %c55 = arith.constant 55 : index
    %56 = memref.load %arg1[%c55] : memref<98xf32, #tpu.memory_space<smem>>
    %57 = vector.broadcast %56 : f32 to vector<1x256xf32>
    %58 = arith.mulf %57, %10 : vector<1x256xf32>
    %59 = arith.addf %55, %58 : vector<1x256xf32>
    %c32_i32 = arith.constant 32 : i32
    %60 = tpu.dynamic_rotate %1 by %c32_i32 dim 1 : vector<1x256xf32>, i32 -> vector<1x256xf32>
    %61 = vector.extract_strided_slice %3 {offsets = [1, 0], sizes = [1, 256], strides = [1, 1]} : vector<7x256xf32> to vector<1x256xf32>
    %62 = arith.mulf %60, %61 : vector<1x256xf32>
    %c32_i32_9 = arith.constant 32 : i32
    %63 = tpu.dynamic_rotate %2 by %c32_i32_9 dim 1 : vector<1x256xf32>, i32 -> vector<1x256xf32>
    %64 = vector.extract_strided_slice %3 {offsets = [1, 0], sizes = [1, 256], strides = [1, 1]} : vector<7x256xf32> to vector<1x256xf32>
    %65 = arith.mulf %63, %64 : vector<1x256xf32>
    %c7 = arith.constant 7 : index
    %66 = memref.load %arg1[%c7] : memref<98xf32, #tpu.memory_space<smem>>
    %67 = vector.broadcast %66 : f32 to vector<1x256xf32>
    %68 = arith.mulf %67, %62 : vector<1x256xf32>
    %c56 = arith.constant 56 : index
    %69 = memref.load %arg1[%c56] : memref<98xf32, #tpu.memory_space<smem>>
    %70 = vector.broadcast %69 : f32 to vector<1x256xf32>
    %71 = arith.mulf %70, %65 : vector<1x256xf32>
    %72 = arith.addf %68, %71 : vector<1x256xf32>
    %73 = arith.addf %17, %72 : vector<1x256xf32>
    %c8 = arith.constant 8 : index
    %74 = memref.load %arg1[%c8] : memref<98xf32, #tpu.memory_space<smem>>
    %75 = vector.broadcast %74 : f32 to vector<1x256xf32>
    %76 = arith.mulf %75, %62 : vector<1x256xf32>
    %c57 = arith.constant 57 : index
    %77 = memref.load %arg1[%c57] : memref<98xf32, #tpu.memory_space<smem>>
    %78 = vector.broadcast %77 : f32 to vector<1x256xf32>
    %79 = arith.mulf %78, %65 : vector<1x256xf32>
    %80 = arith.addf %76, %79 : vector<1x256xf32>
    %81 = arith.addf %24, %80 : vector<1x256xf32>
    %c9 = arith.constant 9 : index
    %82 = memref.load %arg1[%c9] : memref<98xf32, #tpu.memory_space<smem>>
    %83 = vector.broadcast %82 : f32 to vector<1x256xf32>
    %84 = arith.mulf %83, %62 : vector<1x256xf32>
    %c58 = arith.constant 58 : index
    %85 = memref.load %arg1[%c58] : memref<98xf32, #tpu.memory_space<smem>>
    %86 = vector.broadcast %85 : f32 to vector<1x256xf32>
    %87 = arith.mulf %86, %65 : vector<1x256xf32>
    %88 = arith.addf %84, %87 : vector<1x256xf32>
    %89 = arith.addf %31, %88 : vector<1x256xf32>
    %c10 = arith.constant 10 : index
    %90 = memref.load %arg1[%c10] : memref<98xf32, #tpu.memory_space<smem>>
    %91 = vector.broadcast %90 : f32 to vector<1x256xf32>
    %92 = arith.mulf %91, %62 : vector<1x256xf32>
    %c59 = arith.constant 59 : index
    %93 = memref.load %arg1[%c59] : memref<98xf32, #tpu.memory_space<smem>>
    %94 = vector.broadcast %93 : f32 to vector<1x256xf32>
    %95 = arith.mulf %94, %65 : vector<1x256xf32>
    %96 = arith.addf %92, %95 : vector<1x256xf32>
    %97 = arith.addf %38, %96 : vector<1x256xf32>
    %c11 = arith.constant 11 : index
    %98 = memref.load %arg1[%c11] : memref<98xf32, #tpu.memory_space<smem>>
    %99 = vector.broadcast %98 : f32 to vector<1x256xf32>
    %100 = arith.mulf %99, %62 : vector<1x256xf32>
    %c60 = arith.constant 60 : index
    %101 = memref.load %arg1[%c60] : memref<98xf32, #tpu.memory_space<smem>>
    %102 = vector.broadcast %101 : f32 to vector<1x256xf32>
    %103 = arith.mulf %102, %65 : vector<1x256xf32>
    %104 = arith.addf %100, %103 : vector<1x256xf32>
    %105 = arith.addf %45, %104 : vector<1x256xf32>
    %c12 = arith.constant 12 : index
    %106 = memref.load %arg1[%c12] : memref<98xf32, #tpu.memory_space<smem>>
    %107 = vector.broadcast %106 : f32 to vector<1x256xf32>
    %108 = arith.mulf %107, %62 : vector<1x256xf32>
    %c61 = arith.constant 61 : index
    %109 = memref.load %arg1[%c61] : memref<98xf32, #tpu.memory_space<smem>>
    %110 = vector.broadcast %109 : f32 to vector<1x256xf32>
    %111 = arith.mulf %110, %65 : vector<1x256xf32>
    %112 = arith.addf %108, %111 : vector<1x256xf32>
    %113 = arith.addf %52, %112 : vector<1x256xf32>
    %c13 = arith.constant 13 : index
    %114 = memref.load %arg1[%c13] : memref<98xf32, #tpu.memory_space<smem>>
    %115 = vector.broadcast %114 : f32 to vector<1x256xf32>
    %116 = arith.mulf %115, %62 : vector<1x256xf32>
    %c62 = arith.constant 62 : index
    %117 = memref.load %arg1[%c62] : memref<98xf32, #tpu.memory_space<smem>>
    %118 = vector.broadcast %117 : f32 to vector<1x256xf32>
    %119 = arith.mulf %118, %65 : vector<1x256xf32>
    %120 = arith.addf %116, %119 : vector<1x256xf32>
    %121 = arith.addf %59, %120 : vector<1x256xf32>
    %c16_i32 = arith.constant 16 : i32
    %122 = tpu.dynamic_rotate %1 by %c16_i32 dim 1 : vector<1x256xf32>, i32 -> vector<1x256xf32>
    %123 = vector.extract_strided_slice %3 {offsets = [2, 0], sizes = [1, 256], strides = [1, 1]} : vector<7x256xf32> to vector<1x256xf32>
    %124 = arith.mulf %122, %123 : vector<1x256xf32>
    %c16_i32_10 = arith.constant 16 : i32
    %125 = tpu.dynamic_rotate %2 by %c16_i32_10 dim 1 : vector<1x256xf32>, i32 -> vector<1x256xf32>
    %126 = vector.extract_strided_slice %3 {offsets = [2, 0], sizes = [1, 256], strides = [1, 1]} : vector<7x256xf32> to vector<1x256xf32>
    %127 = arith.mulf %125, %126 : vector<1x256xf32>
    %c14 = arith.constant 14 : index
    %128 = memref.load %arg1[%c14] : memref<98xf32, #tpu.memory_space<smem>>
    %129 = vector.broadcast %128 : f32 to vector<1x256xf32>
    %130 = arith.mulf %129, %124 : vector<1x256xf32>
    %c63 = arith.constant 63 : index
    %131 = memref.load %arg1[%c63] : memref<98xf32, #tpu.memory_space<smem>>
    %132 = vector.broadcast %131 : f32 to vector<1x256xf32>
    %133 = arith.mulf %132, %127 : vector<1x256xf32>
    %134 = arith.addf %130, %133 : vector<1x256xf32>
    %135 = arith.addf %73, %134 : vector<1x256xf32>
    %c15 = arith.constant 15 : index
    %136 = memref.load %arg1[%c15] : memref<98xf32, #tpu.memory_space<smem>>
    %137 = vector.broadcast %136 : f32 to vector<1x256xf32>
    %138 = arith.mulf %137, %124 : vector<1x256xf32>
    %c64 = arith.constant 64 : index
    %139 = memref.load %arg1[%c64] : memref<98xf32, #tpu.memory_space<smem>>
    %140 = vector.broadcast %139 : f32 to vector<1x256xf32>
    %141 = arith.mulf %140, %127 : vector<1x256xf32>
    %142 = arith.addf %138, %141 : vector<1x256xf32>
    %143 = arith.addf %81, %142 : vector<1x256xf32>
    %c16 = arith.constant 16 : index
    %144 = memref.load %arg1[%c16] : memref<98xf32, #tpu.memory_space<smem>>
    %145 = vector.broadcast %144 : f32 to vector<1x256xf32>
    %146 = arith.mulf %145, %124 : vector<1x256xf32>
    %c65 = arith.constant 65 : index
    %147 = memref.load %arg1[%c65] : memref<98xf32, #tpu.memory_space<smem>>
    %148 = vector.broadcast %147 : f32 to vector<1x256xf32>
    %149 = arith.mulf %148, %127 : vector<1x256xf32>
    %150 = arith.addf %146, %149 : vector<1x256xf32>
    %151 = arith.addf %89, %150 : vector<1x256xf32>
    %c17 = arith.constant 17 : index
    %152 = memref.load %arg1[%c17] : memref<98xf32, #tpu.memory_space<smem>>
    %153 = vector.broadcast %152 : f32 to vector<1x256xf32>
    %154 = arith.mulf %153, %124 : vector<1x256xf32>
    %c66 = arith.constant 66 : index
    %155 = memref.load %arg1[%c66] : memref<98xf32, #tpu.memory_space<smem>>
    %156 = vector.broadcast %155 : f32 to vector<1x256xf32>
    %157 = arith.mulf %156, %127 : vector<1x256xf32>
    %158 = arith.addf %154, %157 : vector<1x256xf32>
    %159 = arith.addf %97, %158 : vector<1x256xf32>
    %c18 = arith.constant 18 : index
    %160 = memref.load %arg1[%c18] : memref<98xf32, #tpu.memory_space<smem>>
    %161 = vector.broadcast %160 : f32 to vector<1x256xf32>
    %162 = arith.mulf %161, %124 : vector<1x256xf32>
    %c67 = arith.constant 67 : index
    %163 = memref.load %arg1[%c67] : memref<98xf32, #tpu.memory_space<smem>>
    %164 = vector.broadcast %163 : f32 to vector<1x256xf32>
    %165 = arith.mulf %164, %127 : vector<1x256xf32>
    %166 = arith.addf %162, %165 : vector<1x256xf32>
    %167 = arith.addf %105, %166 : vector<1x256xf32>
    %c19 = arith.constant 19 : index
    %168 = memref.load %arg1[%c19] : memref<98xf32, #tpu.memory_space<smem>>
    %169 = vector.broadcast %168 : f32 to vector<1x256xf32>
    %170 = arith.mulf %169, %124 : vector<1x256xf32>
    %c68 = arith.constant 68 : index
    %171 = memref.load %arg1[%c68] : memref<98xf32, #tpu.memory_space<smem>>
    %172 = vector.broadcast %171 : f32 to vector<1x256xf32>
    %173 = arith.mulf %172, %127 : vector<1x256xf32>
    %174 = arith.addf %170, %173 : vector<1x256xf32>
    %175 = arith.addf %113, %174 : vector<1x256xf32>
    %c20 = arith.constant 20 : index
    %176 = memref.load %arg1[%c20] : memref<98xf32, #tpu.memory_space<smem>>
    %177 = vector.broadcast %176 : f32 to vector<1x256xf32>
    %178 = arith.mulf %177, %124 : vector<1x256xf32>
    %c69 = arith.constant 69 : index
    %179 = memref.load %arg1[%c69] : memref<98xf32, #tpu.memory_space<smem>>
    %180 = vector.broadcast %179 : f32 to vector<1x256xf32>
    %181 = arith.mulf %180, %127 : vector<1x256xf32>
    %182 = arith.addf %178, %181 : vector<1x256xf32>
    %183 = arith.addf %121, %182 : vector<1x256xf32>
    %c21 = arith.constant 21 : index
    %184 = memref.load %arg1[%c21] : memref<98xf32, #tpu.memory_space<smem>>
    %185 = vector.broadcast %184 : f32 to vector<1x256xf32>
    %186 = arith.mulf %185, %1 : vector<1x256xf32>
    %c70 = arith.constant 70 : index
    %187 = memref.load %arg1[%c70] : memref<98xf32, #tpu.memory_space<smem>>
    %188 = vector.broadcast %187 : f32 to vector<1x256xf32>
    %189 = arith.mulf %188, %2 : vector<1x256xf32>
    %190 = arith.addf %186, %189 : vector<1x256xf32>
    %191 = arith.addf %135, %190 : vector<1x256xf32>
    %c22 = arith.constant 22 : index
    %192 = memref.load %arg1[%c22] : memref<98xf32, #tpu.memory_space<smem>>
    %193 = vector.broadcast %192 : f32 to vector<1x256xf32>
    %194 = arith.mulf %193, %1 : vector<1x256xf32>
    %c71 = arith.constant 71 : index
    %195 = memref.load %arg1[%c71] : memref<98xf32, #tpu.memory_space<smem>>
    %196 = vector.broadcast %195 : f32 to vector<1x256xf32>
    %197 = arith.mulf %196, %2 : vector<1x256xf32>
    %198 = arith.addf %194, %197 : vector<1x256xf32>
    %199 = arith.addf %143, %198 : vector<1x256xf32>
    %c23 = arith.constant 23 : index
    %200 = memref.load %arg1[%c23] : memref<98xf32, #tpu.memory_space<smem>>
    %201 = vector.broadcast %200 : f32 to vector<1x256xf32>
    %202 = arith.mulf %201, %1 : vector<1x256xf32>
    %c72 = arith.constant 72 : index
    %203 = memref.load %arg1[%c72] : memref<98xf32, #tpu.memory_space<smem>>
    %204 = vector.broadcast %203 : f32 to vector<1x256xf32>
    %205 = arith.mulf %204, %2 : vector<1x256xf32>
    %206 = arith.addf %202, %205 : vector<1x256xf32>
    %207 = arith.addf %151, %206 : vector<1x256xf32>
    %c24 = arith.constant 24 : index
    %208 = memref.load %arg1[%c24] : memref<98xf32, #tpu.memory_space<smem>>
    %209 = vector.broadcast %208 : f32 to vector<1x256xf32>
    %210 = arith.mulf %209, %1 : vector<1x256xf32>
    %c73 = arith.constant 73 : index
    %211 = memref.load %arg1[%c73] : memref<98xf32, #tpu.memory_space<smem>>
    %212 = vector.broadcast %211 : f32 to vector<1x256xf32>
    %213 = arith.mulf %212, %2 : vector<1x256xf32>
    %214 = arith.addf %210, %213 : vector<1x256xf32>
    %215 = arith.addf %159, %214 : vector<1x256xf32>
    %c25 = arith.constant 25 : index
    %216 = memref.load %arg1[%c25] : memref<98xf32, #tpu.memory_space<smem>>
    %217 = vector.broadcast %216 : f32 to vector<1x256xf32>
    %218 = arith.mulf %217, %1 : vector<1x256xf32>
    %c74 = arith.constant 74 : index
    %219 = memref.load %arg1[%c74] : memref<98xf32, #tpu.memory_space<smem>>
    %220 = vector.broadcast %219 : f32 to vector<1x256xf32>
    %221 = arith.mulf %220, %2 : vector<1x256xf32>
    %222 = arith.addf %218, %221 : vector<1x256xf32>
    %223 = arith.addf %167, %222 : vector<1x256xf32>
    %c26 = arith.constant 26 : index
    %224 = memref.load %arg1[%c26] : memref<98xf32, #tpu.memory_space<smem>>
    %225 = vector.broadcast %224 : f32 to vector<1x256xf32>
    %226 = arith.mulf %225, %1 : vector<1x256xf32>
    %c75 = arith.constant 75 : index
    %227 = memref.load %arg1[%c75] : memref<98xf32, #tpu.memory_space<smem>>
    %228 = vector.broadcast %227 : f32 to vector<1x256xf32>
    %229 = arith.mulf %228, %2 : vector<1x256xf32>
    %230 = arith.addf %226, %229 : vector<1x256xf32>
    %231 = arith.addf %175, %230 : vector<1x256xf32>
    %c27 = arith.constant 27 : index
    %232 = memref.load %arg1[%c27] : memref<98xf32, #tpu.memory_space<smem>>
    %233 = vector.broadcast %232 : f32 to vector<1x256xf32>
    %234 = arith.mulf %233, %1 : vector<1x256xf32>
    %c76 = arith.constant 76 : index
    %235 = memref.load %arg1[%c76] : memref<98xf32, #tpu.memory_space<smem>>
    %236 = vector.broadcast %235 : f32 to vector<1x256xf32>
    %237 = arith.mulf %236, %2 : vector<1x256xf32>
    %238 = arith.addf %234, %237 : vector<1x256xf32>
    %239 = arith.addf %183, %238 : vector<1x256xf32>
    %c240_i32 = arith.constant 240 : i32
    %240 = tpu.dynamic_rotate %1 by %c240_i32 dim 1 : vector<1x256xf32>, i32 -> vector<1x256xf32>
    %241 = vector.extract_strided_slice %3 {offsets = [4, 0], sizes = [1, 256], strides = [1, 1]} : vector<7x256xf32> to vector<1x256xf32>
    %242 = arith.mulf %240, %241 : vector<1x256xf32>
    %c240_i32_11 = arith.constant 240 : i32
    %243 = tpu.dynamic_rotate %2 by %c240_i32_11 dim 1 : vector<1x256xf32>, i32 -> vector<1x256xf32>
    %244 = vector.extract_strided_slice %3 {offsets = [4, 0], sizes = [1, 256], strides = [1, 1]} : vector<7x256xf32> to vector<1x256xf32>
    %245 = arith.mulf %243, %244 : vector<1x256xf32>
    %c28 = arith.constant 28 : index
    %246 = memref.load %arg1[%c28] : memref<98xf32, #tpu.memory_space<smem>>
    %247 = vector.broadcast %246 : f32 to vector<1x256xf32>
    %248 = arith.mulf %247, %242 : vector<1x256xf32>
    %c77 = arith.constant 77 : index
    %249 = memref.load %arg1[%c77] : memref<98xf32, #tpu.memory_space<smem>>
    %250 = vector.broadcast %249 : f32 to vector<1x256xf32>
    %251 = arith.mulf %250, %245 : vector<1x256xf32>
    %252 = arith.addf %248, %251 : vector<1x256xf32>
    %253 = arith.addf %191, %252 : vector<1x256xf32>
    %c29 = arith.constant 29 : index
    %254 = memref.load %arg1[%c29] : memref<98xf32, #tpu.memory_space<smem>>
    %255 = vector.broadcast %254 : f32 to vector<1x256xf32>
    %256 = arith.mulf %255, %242 : vector<1x256xf32>
    %c78 = arith.constant 78 : index
    %257 = memref.load %arg1[%c78] : memref<98xf32, #tpu.memory_space<smem>>
    %258 = vector.broadcast %257 : f32 to vector<1x256xf32>
    %259 = arith.mulf %258, %245 : vector<1x256xf32>
    %260 = arith.addf %256, %259 : vector<1x256xf32>
    %261 = arith.addf %199, %260 : vector<1x256xf32>
    %c30 = arith.constant 30 : index
    %262 = memref.load %arg1[%c30] : memref<98xf32, #tpu.memory_space<smem>>
    %263 = vector.broadcast %262 : f32 to vector<1x256xf32>
    %264 = arith.mulf %263, %242 : vector<1x256xf32>
    %c79 = arith.constant 79 : index
    %265 = memref.load %arg1[%c79] : memref<98xf32, #tpu.memory_space<smem>>
    %266 = vector.broadcast %265 : f32 to vector<1x256xf32>
    %267 = arith.mulf %266, %245 : vector<1x256xf32>
    %268 = arith.addf %264, %267 : vector<1x256xf32>
    %269 = arith.addf %207, %268 : vector<1x256xf32>
    %c31 = arith.constant 31 : index
    %270 = memref.load %arg1[%c31] : memref<98xf32, #tpu.memory_space<smem>>
    %271 = vector.broadcast %270 : f32 to vector<1x256xf32>
    %272 = arith.mulf %271, %242 : vector<1x256xf32>
    %c80 = arith.constant 80 : index
    %273 = memref.load %arg1[%c80] : memref<98xf32, #tpu.memory_space<smem>>
    %274 = vector.broadcast %273 : f32 to vector<1x256xf32>
    %275 = arith.mulf %274, %245 : vector<1x256xf32>
    %276 = arith.addf %272, %275 : vector<1x256xf32>
    %277 = arith.addf %215, %276 : vector<1x256xf32>
    %c32 = arith.constant 32 : index
    %278 = memref.load %arg1[%c32] : memref<98xf32, #tpu.memory_space<smem>>
    %279 = vector.broadcast %278 : f32 to vector<1x256xf32>
    %280 = arith.mulf %279, %242 : vector<1x256xf32>
    %c81 = arith.constant 81 : index
    %281 = memref.load %arg1[%c81] : memref<98xf32, #tpu.memory_space<smem>>
    %282 = vector.broadcast %281 : f32 to vector<1x256xf32>
    %283 = arith.mulf %282, %245 : vector<1x256xf32>
    %284 = arith.addf %280, %283 : vector<1x256xf32>
    %285 = arith.addf %223, %284 : vector<1x256xf32>
    %c33 = arith.constant 33 : index
    %286 = memref.load %arg1[%c33] : memref<98xf32, #tpu.memory_space<smem>>
    %287 = vector.broadcast %286 : f32 to vector<1x256xf32>
    %288 = arith.mulf %287, %242 : vector<1x256xf32>
    %c82 = arith.constant 82 : index
    %289 = memref.load %arg1[%c82] : memref<98xf32, #tpu.memory_space<smem>>
    %290 = vector.broadcast %289 : f32 to vector<1x256xf32>
    %291 = arith.mulf %290, %245 : vector<1x256xf32>
    %292 = arith.addf %288, %291 : vector<1x256xf32>
    %293 = arith.addf %231, %292 : vector<1x256xf32>
    %c34 = arith.constant 34 : index
    %294 = memref.load %arg1[%c34] : memref<98xf32, #tpu.memory_space<smem>>
    %295 = vector.broadcast %294 : f32 to vector<1x256xf32>
    %296 = arith.mulf %295, %242 : vector<1x256xf32>
    %c83 = arith.constant 83 : index
    %297 = memref.load %arg1[%c83] : memref<98xf32, #tpu.memory_space<smem>>
    %298 = vector.broadcast %297 : f32 to vector<1x256xf32>
    %299 = arith.mulf %298, %245 : vector<1x256xf32>
    %300 = arith.addf %296, %299 : vector<1x256xf32>
    %301 = arith.addf %239, %300 : vector<1x256xf32>
    %c224_i32 = arith.constant 224 : i32
    %302 = tpu.dynamic_rotate %1 by %c224_i32 dim 1 : vector<1x256xf32>, i32 -> vector<1x256xf32>
    %303 = vector.extract_strided_slice %3 {offsets = [5, 0], sizes = [1, 256], strides = [1, 1]} : vector<7x256xf32> to vector<1x256xf32>
    %304 = arith.mulf %302, %303 : vector<1x256xf32>
    %c224_i32_12 = arith.constant 224 : i32
    %305 = tpu.dynamic_rotate %2 by %c224_i32_12 dim 1 : vector<1x256xf32>, i32 -> vector<1x256xf32>
    %306 = vector.extract_strided_slice %3 {offsets = [5, 0], sizes = [1, 256], strides = [1, 1]} : vector<7x256xf32> to vector<1x256xf32>
    %307 = arith.mulf %305, %306 : vector<1x256xf32>
    %c35 = arith.constant 35 : index
    %308 = memref.load %arg1[%c35] : memref<98xf32, #tpu.memory_space<smem>>
    %309 = vector.broadcast %308 : f32 to vector<1x256xf32>
    %310 = arith.mulf %309, %304 : vector<1x256xf32>
    %c84 = arith.constant 84 : index
    %311 = memref.load %arg1[%c84] : memref<98xf32, #tpu.memory_space<smem>>
    %312 = vector.broadcast %311 : f32 to vector<1x256xf32>
    %313 = arith.mulf %312, %307 : vector<1x256xf32>
    %314 = arith.addf %310, %313 : vector<1x256xf32>
    %315 = arith.addf %253, %314 : vector<1x256xf32>
    %c36 = arith.constant 36 : index
    %316 = memref.load %arg1[%c36] : memref<98xf32, #tpu.memory_space<smem>>
    %317 = vector.broadcast %316 : f32 to vector<1x256xf32>
    %318 = arith.mulf %317, %304 : vector<1x256xf32>
    %c85 = arith.constant 85 : index
    %319 = memref.load %arg1[%c85] : memref<98xf32, #tpu.memory_space<smem>>
    %320 = vector.broadcast %319 : f32 to vector<1x256xf32>
    %321 = arith.mulf %320, %307 : vector<1x256xf32>
    %322 = arith.addf %318, %321 : vector<1x256xf32>
    %323 = arith.addf %261, %322 : vector<1x256xf32>
    %c37 = arith.constant 37 : index
    %324 = memref.load %arg1[%c37] : memref<98xf32, #tpu.memory_space<smem>>
    %325 = vector.broadcast %324 : f32 to vector<1x256xf32>
    %326 = arith.mulf %325, %304 : vector<1x256xf32>
    %c86 = arith.constant 86 : index
    %327 = memref.load %arg1[%c86] : memref<98xf32, #tpu.memory_space<smem>>
    %328 = vector.broadcast %327 : f32 to vector<1x256xf32>
    %329 = arith.mulf %328, %307 : vector<1x256xf32>
    %330 = arith.addf %326, %329 : vector<1x256xf32>
    %331 = arith.addf %269, %330 : vector<1x256xf32>
    %c38 = arith.constant 38 : index
    %332 = memref.load %arg1[%c38] : memref<98xf32, #tpu.memory_space<smem>>
    %333 = vector.broadcast %332 : f32 to vector<1x256xf32>
    %334 = arith.mulf %333, %304 : vector<1x256xf32>
    %c87 = arith.constant 87 : index
    %335 = memref.load %arg1[%c87] : memref<98xf32, #tpu.memory_space<smem>>
    %336 = vector.broadcast %335 : f32 to vector<1x256xf32>
    %337 = arith.mulf %336, %307 : vector<1x256xf32>
    %338 = arith.addf %334, %337 : vector<1x256xf32>
    %339 = arith.addf %277, %338 : vector<1x256xf32>
    %c39 = arith.constant 39 : index
    %340 = memref.load %arg1[%c39] : memref<98xf32, #tpu.memory_space<smem>>
    %341 = vector.broadcast %340 : f32 to vector<1x256xf32>
    %342 = arith.mulf %341, %304 : vector<1x256xf32>
    %c88 = arith.constant 88 : index
    %343 = memref.load %arg1[%c88] : memref<98xf32, #tpu.memory_space<smem>>
    %344 = vector.broadcast %343 : f32 to vector<1x256xf32>
    %345 = arith.mulf %344, %307 : vector<1x256xf32>
    %346 = arith.addf %342, %345 : vector<1x256xf32>
    %347 = arith.addf %285, %346 : vector<1x256xf32>
    %c40 = arith.constant 40 : index
    %348 = memref.load %arg1[%c40] : memref<98xf32, #tpu.memory_space<smem>>
    %349 = vector.broadcast %348 : f32 to vector<1x256xf32>
    %350 = arith.mulf %349, %304 : vector<1x256xf32>
    %c89 = arith.constant 89 : index
    %351 = memref.load %arg1[%c89] : memref<98xf32, #tpu.memory_space<smem>>
    %352 = vector.broadcast %351 : f32 to vector<1x256xf32>
    %353 = arith.mulf %352, %307 : vector<1x256xf32>
    %354 = arith.addf %350, %353 : vector<1x256xf32>
    %355 = arith.addf %293, %354 : vector<1x256xf32>
    %c41 = arith.constant 41 : index
    %356 = memref.load %arg1[%c41] : memref<98xf32, #tpu.memory_space<smem>>
    %357 = vector.broadcast %356 : f32 to vector<1x256xf32>
    %358 = arith.mulf %357, %304 : vector<1x256xf32>
    %c90 = arith.constant 90 : index
    %359 = memref.load %arg1[%c90] : memref<98xf32, #tpu.memory_space<smem>>
    %360 = vector.broadcast %359 : f32 to vector<1x256xf32>
    %361 = arith.mulf %360, %307 : vector<1x256xf32>
    %362 = arith.addf %358, %361 : vector<1x256xf32>
    %363 = arith.addf %301, %362 : vector<1x256xf32>
    %c208_i32 = arith.constant 208 : i32
    %364 = tpu.dynamic_rotate %1 by %c208_i32 dim 1 : vector<1x256xf32>, i32 -> vector<1x256xf32>
    %365 = vector.extract_strided_slice %3 {offsets = [6, 0], sizes = [1, 256], strides = [1, 1]} : vector<7x256xf32> to vector<1x256xf32>
    %366 = arith.mulf %364, %365 : vector<1x256xf32>
    %c208_i32_13 = arith.constant 208 : i32
    %367 = tpu.dynamic_rotate %2 by %c208_i32_13 dim 1 : vector<1x256xf32>, i32 -> vector<1x256xf32>
    %368 = vector.extract_strided_slice %3 {offsets = [6, 0], sizes = [1, 256], strides = [1, 1]} : vector<7x256xf32> to vector<1x256xf32>
    %369 = arith.mulf %367, %368 : vector<1x256xf32>
    %c42 = arith.constant 42 : index
    %370 = memref.load %arg1[%c42] : memref<98xf32, #tpu.memory_space<smem>>
    %371 = vector.broadcast %370 : f32 to vector<1x256xf32>
    %372 = arith.mulf %371, %366 : vector<1x256xf32>
    %c91 = arith.constant 91 : index
    %373 = memref.load %arg1[%c91] : memref<98xf32, #tpu.memory_space<smem>>
    %374 = vector.broadcast %373 : f32 to vector<1x256xf32>
    %375 = arith.mulf %374, %369 : vector<1x256xf32>
    %376 = arith.addf %372, %375 : vector<1x256xf32>
    %377 = arith.addf %315, %376 : vector<1x256xf32>
    %c43 = arith.constant 43 : index
    %378 = memref.load %arg1[%c43] : memref<98xf32, #tpu.memory_space<smem>>
    %379 = vector.broadcast %378 : f32 to vector<1x256xf32>
    %380 = arith.mulf %379, %366 : vector<1x256xf32>
    %c92 = arith.constant 92 : index
    %381 = memref.load %arg1[%c92] : memref<98xf32, #tpu.memory_space<smem>>
    %382 = vector.broadcast %381 : f32 to vector<1x256xf32>
    %383 = arith.mulf %382, %369 : vector<1x256xf32>
    %384 = arith.addf %380, %383 : vector<1x256xf32>
    %385 = arith.addf %323, %384 : vector<1x256xf32>
    %c44 = arith.constant 44 : index
    %386 = memref.load %arg1[%c44] : memref<98xf32, #tpu.memory_space<smem>>
    %387 = vector.broadcast %386 : f32 to vector<1x256xf32>
    %388 = arith.mulf %387, %366 : vector<1x256xf32>
    %c93 = arith.constant 93 : index
    %389 = memref.load %arg1[%c93] : memref<98xf32, #tpu.memory_space<smem>>
    %390 = vector.broadcast %389 : f32 to vector<1x256xf32>
    %391 = arith.mulf %390, %369 : vector<1x256xf32>
    %392 = arith.addf %388, %391 : vector<1x256xf32>
    %393 = arith.addf %331, %392 : vector<1x256xf32>
    %c45 = arith.constant 45 : index
    %394 = memref.load %arg1[%c45] : memref<98xf32, #tpu.memory_space<smem>>
    %395 = vector.broadcast %394 : f32 to vector<1x256xf32>
    %396 = arith.mulf %395, %366 : vector<1x256xf32>
    %c94 = arith.constant 94 : index
    %397 = memref.load %arg1[%c94] : memref<98xf32, #tpu.memory_space<smem>>
    %398 = vector.broadcast %397 : f32 to vector<1x256xf32>
    %399 = arith.mulf %398, %369 : vector<1x256xf32>
    %400 = arith.addf %396, %399 : vector<1x256xf32>
    %401 = arith.addf %339, %400 : vector<1x256xf32>
    %c46 = arith.constant 46 : index
    %402 = memref.load %arg1[%c46] : memref<98xf32, #tpu.memory_space<smem>>
    %403 = vector.broadcast %402 : f32 to vector<1x256xf32>
    %404 = arith.mulf %403, %366 : vector<1x256xf32>
    %c95 = arith.constant 95 : index
    %405 = memref.load %arg1[%c95] : memref<98xf32, #tpu.memory_space<smem>>
    %406 = vector.broadcast %405 : f32 to vector<1x256xf32>
    %407 = arith.mulf %406, %369 : vector<1x256xf32>
    %408 = arith.addf %404, %407 : vector<1x256xf32>
    %409 = arith.addf %347, %408 : vector<1x256xf32>
    %c47 = arith.constant 47 : index
    %410 = memref.load %arg1[%c47] : memref<98xf32, #tpu.memory_space<smem>>
    %411 = vector.broadcast %410 : f32 to vector<1x256xf32>
    %412 = arith.mulf %411, %366 : vector<1x256xf32>
    %c96 = arith.constant 96 : index
    %413 = memref.load %arg1[%c96] : memref<98xf32, #tpu.memory_space<smem>>
    %414 = vector.broadcast %413 : f32 to vector<1x256xf32>
    %415 = arith.mulf %414, %369 : vector<1x256xf32>
    %416 = arith.addf %412, %415 : vector<1x256xf32>
    %417 = arith.addf %355, %416 : vector<1x256xf32>
    %c48 = arith.constant 48 : index
    %418 = memref.load %arg1[%c48] : memref<98xf32, #tpu.memory_space<smem>>
    %419 = vector.broadcast %418 : f32 to vector<1x256xf32>
    %420 = arith.mulf %419, %366 : vector<1x256xf32>
    %c97 = arith.constant 97 : index
    %421 = memref.load %arg1[%c97] : memref<98xf32, #tpu.memory_space<smem>>
    %422 = vector.broadcast %421 : f32 to vector<1x256xf32>
    %423 = arith.mulf %422, %369 : vector<1x256xf32>
    %424 = arith.addf %420, %423 : vector<1x256xf32>
    %425 = arith.addf %363, %424 : vector<1x256xf32>
    %c0_14 = arith.constant 0 : index
    %426 = memref.load %arg2[%c0_14] : memref<1xf32, #tpu.memory_space<smem>>
    %427 = vector.broadcast %426 : f32 to vector<1x256xf32>
    %c3_i32 = arith.constant 3 : i32
    %428 = tpu.dynamic_rotate %377 by %c3_i32 dim 1 : vector<1x256xf32>, i32 -> vector<1x256xf32>
    %429 = vector.extract_strided_slice %4 {offsets = [0, 0], sizes = [1, 256], strides = [1, 1]} : vector<7x256xf32> to vector<1x256xf32>
    %430 = arith.mulf %428, %429 : vector<1x256xf32>
    %431 = arith.addf %427, %430 : vector<1x256xf32>
    %c2_i32 = arith.constant 2 : i32
    %432 = tpu.dynamic_rotate %385 by %c2_i32 dim 1 : vector<1x256xf32>, i32 -> vector<1x256xf32>
    %433 = vector.extract_strided_slice %4 {offsets = [1, 0], sizes = [1, 256], strides = [1, 1]} : vector<7x256xf32> to vector<1x256xf32>
    %434 = arith.mulf %432, %433 : vector<1x256xf32>
    %435 = arith.addf %431, %434 : vector<1x256xf32>
    %c1_i32 = arith.constant 1 : i32
    %436 = tpu.dynamic_rotate %393 by %c1_i32 dim 1 : vector<1x256xf32>, i32 -> vector<1x256xf32>
    %437 = vector.extract_strided_slice %4 {offsets = [2, 0], sizes = [1, 256], strides = [1, 1]} : vector<7x256xf32> to vector<1x256xf32>
    %438 = arith.mulf %436, %437 : vector<1x256xf32>
    %439 = arith.addf %435, %438 : vector<1x256xf32>
    %440 = arith.addf %439, %401 : vector<1x256xf32>
    %c255_i32 = arith.constant 255 : i32
    %441 = tpu.dynamic_rotate %409 by %c255_i32 dim 1 : vector<1x256xf32>, i32 -> vector<1x256xf32>
    %442 = vector.extract_strided_slice %4 {offsets = [4, 0], sizes = [1, 256], strides = [1, 1]} : vector<7x256xf32> to vector<1x256xf32>
    %443 = arith.mulf %441, %442 : vector<1x256xf32>
    %444 = arith.addf %440, %443 : vector<1x256xf32>
    %c254_i32 = arith.constant 254 : i32
    %445 = tpu.dynamic_rotate %417 by %c254_i32 dim 1 : vector<1x256xf32>, i32 -> vector<1x256xf32>
    %446 = vector.extract_strided_slice %4 {offsets = [5, 0], sizes = [1, 256], strides = [1, 1]} : vector<7x256xf32> to vector<1x256xf32>
    %447 = arith.mulf %445, %446 : vector<1x256xf32>
    %448 = arith.addf %444, %447 : vector<1x256xf32>
    %c253_i32 = arith.constant 253 : i32
    %449 = tpu.dynamic_rotate %425 by %c253_i32 dim 1 : vector<1x256xf32>, i32 -> vector<1x256xf32>
    %450 = vector.extract_strided_slice %4 {offsets = [6, 0], sizes = [1, 256], strides = [1, 1]} : vector<7x256xf32> to vector<1x256xf32>
    %451 = arith.mulf %449, %450 : vector<1x256xf32>
    %452 = arith.addf %448, %451 : vector<1x256xf32>
    %453 = arith.negf %452 : vector<1x256xf32>
    %454 = math.exp %453 : vector<1x256xf32>
    %cst_15 = arith.constant 1.000000e+00 : f32
    %455 = vector.broadcast %cst_15 : f32 to vector<1x256xf32>
    %456 = arith.addf %455, %454 : vector<1x256xf32>
    %457 = arith.divf %455, %456 : vector<1x256xf32>
    %458 = vector.shape_cast %457 : vector<1x256xf32> to vector<1x1x256xf32>
    %459 = vector.broadcast %458 : vector<1x1x256xf32> to vector<1x4x256xf32>
    %460 = arith.mulf %0, %459 : vector<1x4x256xf32>
    %c0_16 = arith.constant 0 : index
    %c0_17 = arith.constant 0 : index
    %c0_18 = arith.constant 0 : index
    %461 = vector.load %arg6[%c0_16, %c0_17, %c0_18] : memref<1x4x256xf32, #tpu.memory_space<vmem>>, vector<1x4x256xf32>
    tpu.vector_store %arg6[%c0_16, %c0_17, %c0_18], %460 {strides = array<i32>} : memref<1x4x256xf32, #tpu.memory_space<vmem>>, vector<1x4x256xf32>,
    return
  }
  func.func @transform_0(%arg0: i32) -> i32 {
    %c0_i32 = arith.constant 0 : i32
    %c0_i32_0 = arith.constant 0 : i32
    return %c0_i32 : i32
  }
  func.func @transform_1(%arg0: i32) -> i32 {
    %c0_i32 = arith.constant 0 : i32
    %c0_i32_0 = arith.constant 0 : i32
    return %c0_i32 : i32
  }
  func.func @transform_2(%arg0: i32) -> (i32, i32, i32) {
    %c0_i32 = arith.constant 0 : i32
    %c0_i32_0 = arith.constant 0 : i32
    %c0_i32_1 = arith.constant 0 : i32
    return %arg0, %c0_i32, %c0_i32_0 : i32, i32, i32
  }
  func.func @transform_3(%arg0: i32) -> (i32, i32) {
    %c0_i32 = arith.constant 0 : i32
    %c0_i32_0 = arith.constant 0 : i32
    %c0_i32_1 = arith.constant 0 : i32
    return %c0_i32, %c0_i32_0 : i32, i32
  }
  func.func @transform_4(%arg0: i32) -> (i32, i32) {
    %c0_i32 = arith.constant 0 : i32
    %c0_i32_0 = arith.constant 0 : i32
    %c0_i32_1 = arith.constant 0 : i32
    return %c0_i32, %c0_i32_0 : i32, i32
  }
  func.func @transform_5(%arg0: i32) -> (i32, i32, i32) {
    %c0_i32 = arith.constant 0 : i32
    %c0_i32_0 = arith.constant 0 : i32
    %c0_i32_1 = arith.constant 0 : i32
    return %arg0, %c0_i32, %c0_i32_0 : i32, i32, i32
  }
}

</mosaic_0001>

<llo_original>
// kernel: tpu_custom_call.1
$region0: #{tpu_custom_call.1}
  #allocation0 [shape = 'u32[]', space=smem, size = 0x4, offset = 0x4, fixed_abs, tag = 'smem constant byte address 0x4 - core index']
  #allocation1 [shape = 'u32[144,128]{1,0:T(1,128)}', space=vmem, size = 0x12000, scoped, tag = 'internal scratch']
  #allocation2 [shape = 'f32[1]{0:T(128)S(6)}', space=smem, size = 0x200, scoped, tag = 'scoped memory for tpu_custom_call.1']
  %s0 = inlined_call_operand.vmem [shape: f32[98], index: 0, kind: input, shape index: {}]
  %s1 = inlined_call_operand.<no memory space> [shape: f32[1], index: 1, kind: input, shape index: {}]
  %s2 = inlined_call_operand.hbm [shape: f32[2,4,256], index: 2, kind: input, shape index: {}]
  %s3 = inlined_call_operand.hbm [shape: f32[7,256], index: 3, kind: input, shape index: {}]
  %s4 = inlined_call_operand.hbm [shape: f32[7,256], index: 4, kind: input, shape index: {}]
  %s5 = inlined_call_operand.hbm [shape: f32[2,4,256], index: 5, kind: output, shape index: {}]
  %s6 = sld [smem:[#allocation0]]
  $region69: #{tpu_custom_call.1} parent=0
    _
  %s8 = ssub.s32 1, %s6
  %s9 = scalar_select 0, %s8, %s6
  %10 = sst [smem:[#allocation2]] %s1
  $region1: #{tpu_custom_call.1} parent=0
    #allocation3 [shape = 'u8[512]{0}', space=smem, size = 0x200, scoped, tag = 'input window, operand 0, single buffered']
    #allocation4 [shape = 's32[2]{0}', space=sflag, size = 0x8, scoped, tag = 'scoped memory for tpu_custom_call.1']
    #allocation5 [shape = 's32[2]{0}', space=sflag, size = 0x8, scoped, tag = 'scoped memory for tpu_custom_call.1']
    #allocation6 [shape = 's32[2]{0}', space=sflag, size = 0x8, scoped, tag = 'scoped memory for tpu_custom_call.1']
    #allocation7 [shape = 'u8[8192]{0}', space=vmem, size = 0x2000, scoped, tag = 'input window, operand 2']
    #allocation8 [shape = 'u8[8192]{0}', space=vmem, size = 0x2000, scoped, tag = 'input window, operand 3, single buffered']
    #allocation9 [shape = 's32[1]{0}', space=sflag, size = 0x4, scoped, tag = 'scoped memory for tpu_custom_call.1']
    #allocation10 [shape = 'u8[8192]{0}', space=vmem, size = 0x2000, scoped, tag = 'input window, operand 4, single buffered']
    #allocation11 [shape = 'u8[8192]{0}', space=vmem, size = 0x2000, scoped, tag = 'output window, operand 0']
    %11 = vsyncpa [#allocation6], 0
    %12 = vsyncpa [#allocation4], 0
    %s13 = scalar_lea.sflag [#allocation4], 1
    %14 = vsyncpa %s13, 0
    %15 = vsyncpa [#allocation9], 0
    %16 = vsyncpa [#allocation5], 0
    %s17 = scalar_lea.sflag [#allocation5], 1
    %18 = vsyncpa %s17, 0
    loop: start=0, step=1, limit=4
    $region2: #{tpu_custom_call.1} parent=1 // loop_pre_header
      _
    $region3: #{tpu_custom_call.1} parent=1 // loop_header
      %s20 = sphi 0, %s24
      %p21 = scmp.ge.s32.totalorder %s20, 4
      %s28 = sphi 0, %s28
      %s30 = sphi 0, %s28
      %s31 = sphi 0, %s30
      %s45 = sphi 0, %s31
      %s49 = sphi 0, %s49
      %s51 = sphi 0, %s49
      %s52 = sphi 0, %s51
      %s66 = sphi 0, %s52
      %s72 = sphi 0, %s74
      %s75 = sphi 0, %s72
      %s76 = sphi 0, %s75
      %s92 = sphi 0, %s76
      %s96 = sphi 0, %s96
      %s98 = sphi 0, %s96
      %s99 = sphi 0, %s98
      %s113 = sphi 0, %s99
      %s117 = sphi 0, %s117
      %s119 = sphi 0, %s117
      %s120 = sphi 0, %s119
      %s134 = sphi 0, %s120
      %s140 = sphi 0, %s142
      %s143 = sphi 0, %s140
      %s144 = sphi 0, %s143
      %s160 = sphi 0, %s144
    $region4: #{tpu_custom_call.1} parent=1 // loop_header_branch
      %23 = sbr.rel (%p21) target = $region8
    $region5: #{tpu_custom_call.1} parent=1 // loop_body
      %s25 = ssub.s32 %s20, 1
      %s26 = ssub.s32 %s20, 2
      %s27 = sadd.s32 %s20, 1
      %s29 = sadd.s32 %s28, 1
      %p32 = scmp.eq.s32.totalorder %s20, 1
      %p33 = scmp.ne.s32.totalorder %s28, %s30
      %p34 = scmp.eq.s32.totalorder %s20, 0
      %p35 = por %p33, %p34
      %p36 = scmp.ne.s32.totalorder %s28, %s30
      %p37 = scmp.eq.s32.totalorder %s25, 1
      %p38 = por %p36, %p37
      %p39 = scmp.ne.s32.totalorder %s30, %s31
      %p40 = scmp.eq.s32.totalorder %s25, 0
      %p41 = por %p39, %p40
      %p42 = scmp.ne.s32.totalorder %s30, %s31
      %p43 = scmp.eq.s32.totalorder %s26, 1
      %p44 = por %p42, %p43
      %p46 = scmp.ne.s32.totalorder %s31, %s45
      %p47 = scmp.eq.s32.totalorder %s26, 0
      %p48 = por %p46, %p47
      %s50 = sadd.s32 %s49, 1
      %p53 = scmp.eq.s32.totalorder %s20, 1
      %p54 = scmp.ne.s32.totalorder %s49, %s51
      %p55 = scmp.eq.s32.totalorder %s20, 0
      %p56 = por %p54, %p55
      %p57 = scmp.ne.s32.totalorder %s49, %s51
      %p58 = scmp.eq.s32.totalorder %s25, 1
      %p59 = por %p57, %p58
      %p60 = scmp.ne.s32.totalorder %s51, %s52
      %p61 = scmp.eq.s32.totalorder %s25, 0
      %p62 = por %p60, %p61
      %p63 = scmp.ne.s32.totalorder %s51, %s52
      %p64 = scmp.eq.s32.totalorder %s26, 1
      %p65 = por %p63, %p64
      %p67 = scmp.ne.s32.totalorder %s52, %s66
      %p68 = scmp.eq.s32.totalorder %s26, 0
      %p69 = por %p67, %p68
      %s70 = ssub.s32 %s20, %s27
      %p71 = scmp.eq.s32.totalorder %s70, 0
      %s73 = sadd.s32 %s72, 1
      %s74 = scalar_select %p71, %s72, %s73
      %p77 = pneg %p71
      %p78 = scmp.eq.s32.totalorder %s20, 1
      %p79 = por %p77, %p78
      %p80 = scmp.ne.s32.totalorder %s72, %s75
      %p81 = scmp.eq.s32.totalorder %s20, 0
      %p82 = por %p80, %p81
      %p83 = scmp.ne.s32.totalorder %s72, %s75
      %p84 = scmp.eq.s32.totalorder %s25, 1
      %p85 = por %p83, %p84
      %p86 = scmp.ne.s32.totalorder %s75, %s76
      %p87 = scmp.eq.s32.totalorder %s25, 0
      %p88 = por %p86, %p87
      %p89 = scmp.ne.s32.totalorder %s75, %s76
      %p90 = scmp.eq.s32.totalorder %s26, 1
      %p91 = por %p89, %p90
      %p93 = scmp.ne.s32.totalorder %s76, %s92
      %p94 = scmp.eq.s32.totalorder %s26, 0
      %p95 = por %p93, %p94
      %s97 = sadd.s32 %s96, 1
      %p100 = scmp.eq.s32.totalorder %s20, 1
      %p101 = scmp.ne.s32.totalorder %s96, %s98
      %p102 = scmp.eq.s32.totalorder %s20, 0
      %p103 = por %p101, %p102
      %p104 = scmp.ne.s32.totalorder %s96, %s98
      %p105 = scmp.eq.s32.totalorder %s25, 1
      %p106 = por %p104, %p105
      %p107 = scmp.ne.s32.totalorder %s98, %s99
      %p108 = scmp.eq.s32.totalorder %s25, 0
      %p109 = por %p107, %p108
      %p110 = scmp.ne.s32.totalorder %s98, %s99
      %p111 = scmp.eq.s32.totalorder %s26, 1
      %p112 = por %p110, %p111
      %p114 = scmp.ne.s32.totalorder %s99, %s113
      %p115 = scmp.eq.s32.totalorder %s26, 0
      %p116 = por %p114, %p115
      %s118 = sadd.s32 %s117, 1
      %p121 = scmp.eq.s32.totalorder %s20, 1
      %p122 = scmp.ne.s32.totalorder %s117, %s119
      %p123 = scmp.eq.s32.totalorder %s20, 0
      %p124 = por %p122, %p123
      %p125 = scmp.ne.s32.totalorder %s117, %s119
      %p126 = scmp.eq.s32.totalorder %s25, 1
      %p127 = por %p125, %p126
      %p128 = scmp.ne.s32.totalorder %s119, %s120
      %p129 = scmp.eq.s32.totalorder %s25, 0
      %p130 = por %p128, %p129
      %p131 = scmp.ne.s32.totalorder %s119, %s120
      %p132 = scmp.eq.s32.totalorder %s26, 1
      %p133 = por %p131, %p132
      %p135 = scmp.ne.s32.totalorder %s120, %s134
      %p136 = scmp.eq.s32.totalorder %s26, 0
      %p137 = por %p135, %p136
      %s138 = ssub.s32 %s20, %s27
      %p139 = scmp.eq.s32.totalorder %s138, 0
      %s141 = sadd.s32 %s140, 1
      %s142 = scalar_select %p139, %s140, %s141
      %p145 = pneg %p139
      %p146 = scmp.eq.s32.totalorder %s20, 1
      %p147 = por %p145, %p146
      %p148 = scmp.ne.s32.totalorder %s140, %s143
      %p149 = scmp.eq.s32.totalorder %s20, 0
      %p150 = por %p148, %p149
      %p151 = scmp.ne.s32.totalorder %s140, %s143
      %p152 = scmp.eq.s32.totalorder %s25, 1
      %p153 = por %p151, %p152
      %p154 = scmp.ne.s32.totalorder %s143, %s144
      %p155 = scmp.eq.s32.totalorder %s25, 0
      %p156 = por %p154, %p155
      %p157 = scmp.ne.s32.totalorder %s143, %s144
      %p158 = scmp.eq.s32.totalorder %s26, 1
      %p159 = por %p157, %p158
      %p161 = scmp.ne.s32.totalorder %s144, %s160
      %p162 = scmp.eq.s32.totalorder %s26, 0
      %p163 = por %p161, %p162
      %p164 = scmp.le.s32.totalorder 1, %s20
      %p165 = scmp.lt.s32.totalorder %s20, 3
      %p166 = pnand %p164, %p165
      %p167 = pneg %p166
      // Predicated region
      $region9: #{tpu_custom_call.1} parent=5 // pred_check
        _
      $region10: #{tpu_custom_call.1} parent=5 // pred_check_branch
        %169 = sbr.rel (%p166) target = $region12
      $region11: #{tpu_custom_call.1} parent=5 // pred_region
        %s170 = ssub.s32 %s20, 1
        // Predicated region
        $region13: #{tpu_custom_call.1} parent=11 // pred_check
          %p171 = pneg %p41
        $region14: #{tpu_custom_call.1} parent=11 // pred_check_branch
          %173 = sbr.rel (%p171) target = $region16
        $region15: #{tpu_custom_call.1} parent=11 // pred_region
          %s175 = ssub.s32 16, 16
          %176 = vsyncadd [#allocation6], %s175
          %s178 = sshll.u32 %s0, 4
          %s179 = int_to_ptr.vmem [resolvable:$true] %s178
          %181 = dma.vmem_to_smem %s179, 16, [#allocation3], [#allocation6]
        $region16: #{tpu_custom_call.1} parent=11 // pred_fallthru
          _
        // Predicated region
        $region17: #{tpu_custom_call.1} parent=11 // pred_check
          %p182 = pneg %p62
        $region18: #{tpu_custom_call.1} parent=11 // pred_check_branch
          %184 = sbr.rel (%p182) target = $region20
        $region19: #{tpu_custom_call.1} parent=11 // pred_region
          _
        $region20: #{tpu_custom_call.1} parent=11 // pred_fallthru
          _
        // Predicated region
        $region21: #{tpu_custom_call.1} parent=11 // pred_check
          %p185 = pneg %p109
        $region22: #{tpu_custom_call.1} parent=11 // pred_check_branch
          %187 = sbr.rel (%p185) target = $region24
        $region23: #{tpu_custom_call.1} parent=11 // pred_region
          %s189 = ssub.s32 256, 256
          %190 = vsyncadd [#allocation9], %s189
          %s192 = sshll.u32 [#allocation8], 4
          %s193 = int_to_ptr.vmem [resolvable:$true] %s192
          %195 = dma.hbm_to_vmem [thread:$0]  %s3, 256, %s193, [#allocation9]
        $region24: #{tpu_custom_call.1} parent=11 // pred_fallthru
          _
        // Predicated region
        $region25: #{tpu_custom_call.1} parent=11 // pred_check
          %p196 = pneg %p130
        $region26: #{tpu_custom_call.1} parent=11 // pred_check_branch
          %198 = sbr.rel (%p196) target = $region28
        $region27: #{tpu_custom_call.1} parent=11 // pred_region
          %s200 = ssub.s32 256, 256
          %201 = vsyncadd [#allocation9], %s200
          %s203 = sshll.u32 [#allocation10], 4
          %s204 = int_to_ptr.vmem [resolvable:$true] %s203
          %206 = dma.hbm_to_vmem [thread:$0]  %s4, 256, %s204, [#allocation9]
        $region28: #{tpu_custom_call.1} parent=11 // pred_fallthru
          _
      $region12: #{tpu_custom_call.1} parent=5 // pred_fallthru
        _
      %p207 = scmp.lt.s32.totalorder %s20, 2
      // Predicated region
      $region29: #{tpu_custom_call.1} parent=5 // pred_check
        %p208 = pneg %p207
      $region30: #{tpu_custom_call.1} parent=5 // pred_check_branch
        %210 = sbr.rel (%p208) target = $region32
      $region31: #{tpu_custom_call.1} parent=5 // pred_region
        // Predicated region
        $region33: #{tpu_custom_call.1} parent=31 // pred_check
          %p211 = pneg %p82
        $region34: #{tpu_custom_call.1} parent=31 // pred_check_branch
          %213 = sbr.rel (%p211) target = $region36
        $region35: #{tpu_custom_call.1} parent=31 // pred_region
          %s214 = sand.u32 %s72, 1
          %s215 = scalar_lea.sflag [#allocation4], %s214
          %s216 = sand.u32 %s72, 1
          %s217 = smul.addr %s216, 8
          %s218 = scalar_lea.vmem [#allocation7], %s217
          %s220 = ssub.s32 128, 128
          %221 = vsyncadd %s215, %s220
          %s222 = smul.addr %s20, 2
          %s223 = smul.addr %s222, 64
          %s224 = scalar_lea.hbm %s2, %s223
          %s226 = sshll.u32 %s218, 4
          %s227 = int_to_ptr.vmem [resolvable:$true] %s226
          %229 = dma.hbm_to_vmem [thread:$0]  %s224, 128, %s227, %s215
        $region36: #{tpu_custom_call.1} parent=31 // pred_fallthru
          _
      $region32: #{tpu_custom_call.1} parent=5 // pred_fallthru
        _
      %p230 = scmp.le.s32.totalorder 1, %s20
      %p231 = scmp.lt.s32.totalorder %s20, 3
      %p232 = pnand %p230, %p231
      %p233 = pneg %p232
      // Predicated region
      $region37: #{tpu_custom_call.1} parent=5 // pred_check
        _
      $region38: #{tpu_custom_call.1} parent=5 // pred_check_branch
        %235 = sbr.rel (%p232) target = $region40
      $region39: #{tpu_custom_call.1} parent=5 // pred_region
        %s236 = ssub.s32 %s20, 1
        // Predicated region
        $region41: #{tpu_custom_call.1} parent=39 // pred_check
          %p237 = pneg %p41
        $region42: #{tpu_custom_call.1} parent=39 // pred_check_branch
          %239 = sbr.rel (%p237) target = $region44
        $region43: #{tpu_custom_call.1} parent=39 // pred_region
          %240 = dma.done [#allocation6], 16
        $region44: #{tpu_custom_call.1} parent=39 // pred_fallthru
          _
        %s241 = sand.u32 %s75, 1
        %s242 = scalar_lea.sflag [#allocation4], %s241
        %s243 = sand.u32 %s75, 1
        %s244 = smul.addr %s243, 8
        %s245 = scalar_lea.vmem [#allocation7], %s244
        // Predicated region
        $region45: #{tpu_custom_call.1} parent=39 // pred_check
          %p246 = pneg %p88
        $region46: #{tpu_custom_call.1} parent=39 // pred_check_branch
          %248 = sbr.rel (%p246) target = $region48
        $region47: #{tpu_custom_call.1} parent=39 // pred_region
          %249 = dma.done %s242, 128
        $region48: #{tpu_custom_call.1} parent=39 // pred_fallthru
          _
        // Predicated region
        $region49: #{tpu_custom_call.1} parent=39 // pred_check
          %p250 = pneg %p109
        $region50: #{tpu_custom_call.1} parent=39 // pred_check_branch
          %252 = sbr.rel (%p250) target = $region52
        $region51: #{tpu_custom_call.1} parent=39 // pred_region
          %253 = dma.done [#allocation9], 256
        $region52: #{tpu_custom_call.1} parent=39 // pred_fallthru
          _
        // Predicated region
        $region53: #{tpu_custom_call.1} parent=39 // pred_check
          %p254 = pneg %p130
        $region54: #{tpu_custom_call.1} parent=39 // pred_check_branch
          %256 = sbr.rel (%p254) target = $region56
        $region55: #{tpu_custom_call.1} parent=39 // pred_region
          %257 = dma.done [#allocation9], 256
        $region56: #{tpu_custom_call.1} parent=39 // pred_fallthru
          _
        %258 = sfence
        %p259 = pneg %p41
        %p260 = pneg %p38
        %p261 = pneg %p62
        %p262 = pneg %p59
        %s263 = sand.u32 %s75, 1
        %s264 = scalar_lea.sflag [#allocation4], %s263
        %s265 = sand.u32 %s75, 1
        %s266 = smul.addr %s265, 8
        %s267 = scalar_lea.vmem [#allocation7], %s266
        %p268 = pneg %p88
        %p269 = pneg %p85
        %p270 = pneg %p109
        %p271 = pneg %p106
        %p272 = pneg %p130
        %p273 = pneg %p127
        %p274 = pneg %p156
        %p275 = pneg %p153
        %s276 = sand.u32 %s143, 1
        %s277 = scalar_lea.sflag [#allocation5], %s276
        %s278 = sand.u32 %s143, 1
        %s279 = smul.addr %s278, 8
        %s280 = scalar_lea.vmem [#allocation11], %s279
        %v281 = vld [vmem:[%s245] sm:$0xff]
        %v283 = vcombine.high %v281, %v281
        %vm285 = vcmask 1043456
        %v286 = vsel %vm285, %v281, -inf
        %v287 = vrot.slane %v286, 4
        %v288 = vmax.f32 %v286, %v287
        %v289 = vrot.slane %v288, 2
        %v290 = vmax.f32 %v288, %v289
        %v291 = vrot.slane %v290, 1
        %v292 = vmax.f32 %v290, %v291
        %v293 = vsel %vm285, %v283, -inf
        %v294 = vrot.slane %v293, 4
        %v295 = vmax.f32 %v293, %v294
        %v296 = vrot.slane %v295, 2
        %v297 = vmax.f32 %v295, %v296
        %v298 = vrot.slane %v297, 1
        %v299 = vmax.f32 %v297, %v298
        %v300 = vsel %vm285, %v281, 0.0
        %v301 = vrot.slane %v300, 4
        %v302 = vadd.f32 %v300, %v301
        %v303 = vrot.slane %v302, 2
        %v304 = vadd.f32 %v302, %v303
        %v305 = vrot.slane %v304, 1
        %v306 = vadd.f32 %v304, %v305
        %v307 = vsel %vm285, %v283, 0.0
        %v308 = vrot.slane %v307, 4
        %v309 = vadd.f32 %v307, %v308
        %v310 = vrot.slane %v309, 2
        %v311 = vadd.f32 %v309, %v310
        %v312 = vrot.slane %v311, 1
        %v313 = vadd.f32 %v311, %v312
        %v314 = vld [vmem:[#allocation8] sm:$0x7f]
        %v315 = vld [vmem:[#allocation8 + $0x8] sm:$0x7f]
        %v316 = vld [vmem:[#allocation10] sm:$0x7f]
        %v317 = vld [vmem:[#allocation10 + $0x8] sm:$0x7f]
        %318 = vrot.lane.b32.xlu0 %v292, 48
        %v319 = vpop.permute.xlu0 %318
        %320 = vrot.lane.b32.xlu0 %v299, 48
        %v321 = vpop.permute.xlu0 %320
        %v322 = vlaneseq
        %v323 = vand.u32 %v322, 127
        %vm324 = vcmp.lt.s32.totalorder %v323, 48
        %v325 = vsel %vm324, %v319, %v321
        %v326 = vsel %vm324, %v321, %v319
        %v327 = vmul.f32 %v326, %v314
        %v328 = vmul.f32 %v325, %v315
        %329 = vrot.lane.b32.xlu0 %v306, 48
        %v330 = vpop.permute.xlu0 %329
        %331 = vrot.lane.b32.xlu0 %v313, 48
        %v332 = vpop.permute.xlu0 %331
        %v333 = vsel %vm324, %v330, %v332
        %v334 = vsel %vm324, %v332, %v330
        %v335 = vmul.f32 %v334, %v314
        %v336 = vmul.f32 %v333, %v315
        %s337 = sld [smem:[#allocation3]]
        %v338 = vstv %s337
        %v339 = vmul.f32 %v338, %v327
        %v340 = vmul.f32 %v338, %v328
        %s341 = sld [smem:[#allocation3 + $0x31]]
        %v342 = vstv %s341
        %v343 = vmul.f32 %v342, %v335
        %v344 = vmul.f32 %v342, %v336
        %v345 = vadd.f32 %v339, %v343
        %v346 = vadd.f32 %v340, %v344
        %s347 = sld [smem:[#allocation3 + $0x1]]
        %v348 = vstv %s347
        %v349 = vmul.f32 %v348, %v327
        %v350 = vmul.f32 %v348, %v328
        %s351 = sld [smem:[#allocation3 + $0x32]]
        %v352 = vstv %s351
        %v353 = vmul.f32 %v352, %v335
        %v354 = vmul.f32 %v352, %v336
        %v355 = vadd.f32 %v349, %v353
        %v356 = vadd.f32 %v350, %v354
        %s357 = sld [smem:[#allocation3 + $0x2]]
        %v358 = vstv %s357
        %v359 = vmul.f32 %v358, %v327
        %v360 = vmul.f32 %v358, %v328
        %s361 = sld [smem:[#allocation3 + $0x33]]
        %v362 = vstv %s361
        %v363 = vmul.f32 %v362, %v335
        %v364 = vmul.f32 %v362, %v336
        %v365 = vadd.f32 %v359, %v363
        %v366 = vadd.f32 %v360, %v364
        %s367 = sld [smem:[#allocation3 + $0x3]]
        %v368 = vstv %s367
        %v369 = vmul.f32 %v368, %v327
        %v370 = vmul.f32 %v368, %v328
        %s371 = sld [smem:[#allocation3 + $0x34]]
        %v372 = vstv %s371
        %v373 = vmul.f32 %v372, %v335
        %v374 = vmul.f32 %v372, %v336
        %v375 = vadd.f32 %v369, %v373
        %v376 = vadd.f32 %v370, %v374
        %s377 = sld [smem:[#allocation3 + $0x4]]
        %v378 = vstv %s377
        %v379 = vmul.f32 %v378, %v327
        %v380 = vmul.f32 %v378, %v328
        %s381 = sld [smem:[#allocation3 + $0x35]]
        %v382 = vstv %s381
        %v383 = vmul.f32 %v382, %v335
        %v384 = vmul.f32 %v382, %v336
        %v385 = vadd.f32 %v379, %v383
        %v386 = vadd.f32 %v380, %v384
        %s387 = sld [smem:[#allocation3 + $0x5]]
        %v388 = vstv %s387
        %v389 = vmul.f32 %v388, %v327
        %v390 = vmul.f32 %v388, %v328
        %s391 = sld [smem:[#allocation3 + $0x36]]
        %v392 = vstv %s391
        %v393 = vmul.f32 %v392, %v335
        %v394 = vmul.f32 %v392, %v336
        %v395 = vadd.f32 %v389, %v393
        %v396 = vadd.f32 %v390, %v394
        %s397 = sld [smem:[#allocation3 + $0x6]]
        %v398 = vstv %s397
        %v399 = vmul.f32 %v398, %v327
        %v400 = vmul.f32 %v398, %v328
        %s401 = sld [smem:[#allocation3 + $0x37]]
        %v402 = vstv %s401
        %v403 = vmul.f32 %v402, %v335
        %v404 = vmul.f32 %v402, %v336
        %v405 = vadd.f32 %v399, %v403
        %v406 = vadd.f32 %v400, %v404
        %407 = vrot.lane.b32.xlu0 %v292, 32
        %v408 = vpop.permute.xlu0 %407
        %409 = vrot.lane.b32.xlu0 %v299, 32
        %v410 = vpop.permute.xlu0 %409
        %vm411 = vcmp.lt.s32.totalorder %v323, 32
        %v412 = vsel %vm411, %v408, %v410
        %v413 = vsel %vm411, %v410, %v408
        %v416 = vrot.slane %v314, 1
        %v417 = vrot.slane %v315, 1
        %v420 = vmul.f32 %v413, %v416
        %v421 = vmul.f32 %v412, %v417
        %422 = vrot.lane.b32.xlu0 %v306, 32
        %v423 = vpop.permute.xlu0 %422
        %424 = vrot.lane.b32.xlu0 %v313, 32
        %v425 = vpop.permute.xlu0 %424
        %v426 = vsel %vm411, %v423, %v425
        %v427 = vsel %vm411, %v425, %v423
        %v428 = vmul.f32 %v427, %v416
        %v429 = vmul.f32 %v426, %v417
        %s430 = sld [smem:[#allocation3 + $0x7]]
        %v431 = vstv %s430
        %v432 = vmul.f32 %v431, %v420
        %v433 = vmul.f32 %v431, %v421
        %s434 = sld [smem:[#allocation3 + $0x38]]
        %v435 = vstv %s434
        %v436 = vmul.f32 %v435, %v428
        %v437 = vmul.f32 %v435, %v429
        %v438 = vadd.f32 %v432, %v436
        %v439 = vadd.f32 %v433, %v437
        %v440 = vadd.f32 %v345, %v438
        %v441 = vadd.f32 %v346, %v439
        %s442 = sld [smem:[#allocation3 + $0x8]]
        %v443 = vstv %s442
        %v444 = vmul.f32 %v443, %v420
        %v445 = vmul.f32 %v443, %v421
        %s446 = sld [smem:[#allocation3 + $0x39]]
        %v447 = vstv %s446
        %v448 = vmul.f32 %v447, %v428
        %v449 = vmul.f32 %v447, %v429
        %v450 = vadd.f32 %v444, %v448
        %v451 = vadd.f32 %v445, %v449
        %v452 = vadd.f32 %v355, %v450
        %v453 = vadd.f32 %v356, %v451
        %s454 = sld [smem:[#allocation3 + $0x9]]
        %v455 = vstv %s454
        %v456 = vmul.f32 %v455, %v420
        %v457 = vmul.f32 %v455, %v421
        %s458 = sld [smem:[#allocation3 + $0x3a]]
        %v459 = vstv %s458
        %v460 = vmul.f32 %v459, %v428
        %v461 = vmul.f32 %v459, %v429
        %v462 = vadd.f32 %v456, %v460
        %v463 = vadd.f32 %v457, %v461
        %v464 = vadd.f32 %v365, %v462
        %v465 = vadd.f32 %v366, %v463
        %s466 = sld [smem:[#allocation3 + $0xa]]
        %v467 = vstv %s466
        %v468 = vmul.f32 %v467, %v420
        %v469 = vmul.f32 %v467, %v421
        %s470 = sld [smem:[#allocation3 + $0x3b]]
        %v471 = vstv %s470
        %v472 = vmul.f32 %v471, %v428
        %v473 = vmul.f32 %v471, %v429
        %v474 = vadd.f32 %v468, %v472
        %v475 = vadd.f32 %v469, %v473
        %v476 = vadd.f32 %v375, %v474
        %v477 = vadd.f32 %v376, %v475
        %s478 = sld [smem:[#allocation3 + $0xb]]
        %v479 = vstv %s478
        %v480 = vmul.f32 %v479, %v420
        %v481 = vmul.f32 %v479, %v421
        %s482 = sld [smem:[#allocation3 + $0x3c]]
        %v483 = vstv %s482
        %v484 = vmul.f32 %v483, %v428
        %v485 = vmul.f32 %v483, %v429
        %v486 = vadd.f32 %v480, %v484
        %v487 = vadd.f32 %v481, %v485
        %v488 = vadd.f32 %v385, %v486
        %v489 = vadd.f32 %v386, %v487
        %s490 = sld [smem:[#allocation3 + $0xc]]
        %v491 = vstv %s490
        %v492 = vmul.f32 %v491, %v420
        %v493 = vmul.f32 %v491, %v421
        %s494 = sld [smem:[#allocation3 + $0x3d]]
        %v495 = vstv %s494
        %v496 = vmul.f32 %v495, %v428
        %v497 = vmul.f32 %v495, %v429
        %v498 = vadd.f32 %v492, %v496
        %v499 = vadd.f32 %v493, %v497
        %v500 = vadd.f32 %v395, %v498
        %v501 = vadd.f32 %v396, %v499
        %s502 = sld [smem:[#allocation3 + $0xd]]
        %v503 = vstv %s502
        %v504 = vmul.f32 %v503, %v420
        %v505 = vmul.f32 %v503, %v421
        %s506 = sld [smem:[#allocation3 + $0x3e]]
        %v507 = vstv %s506
        %v508 = vmul.f32 %v507, %v428
        %v509 = vmul.f32 %v507, %v429
        %v510 = vadd.f32 %v504, %v508
        %v511 = vadd.f32 %v505, %v509
        %v512 = vadd.f32 %v405, %v510
        %v513 = vadd.f32 %v406, %v511
        %514 = vrot.lane.b32.xlu0 %v292, 16
        %v515 = vpop.permute.xlu0 %514
        %516 = vrot.lane.b32.xlu0 %v299, 16
        %v517 = vpop.permute.xlu0 %516
        %vm518 = vcmp.lt.s32.totalorder %v323, 16
        %v519 = vsel %vm518, %v515, %v517
        %v520 = vsel %vm518, %v517, %v515
        %v521 = vrot.slane %v314, 2
        %v522 = vrot.slane %v315, 2
        %v525 = vmul.f32 %v520, %v521
        %v526 = vmul.f32 %v519, %v522
        %527 = vrot.lane.b32.xlu0 %v306, 16
        %v528 = vpop.permute.xlu0 %527
        %529 = vrot.lane.b32.xlu0 %v313, 16
        %v530 = vpop.permute.xlu0 %529
        %v531 = vsel %vm518, %v528, %v530
        %v532 = vsel %vm518, %v530, %v528
        %v533 = vmul.f32 %v532, %v521
        %v534 = vmul.f32 %v531, %v522
        %s535 = sld [smem:[#allocation3 + $0xe]]
        %v536 = vstv %s535
        %v537 = vmul.f32 %v536, %v525
        %v538 = vmul.f32 %v536, %v526
        %s539 = sld [smem:[#allocation3 + $0x3f]]
        %v540 = vstv %s539
        %v541 = vmul.f32 %v540, %v533
        %v542 = vmul.f32 %v540, %v534
        %v543 = vadd.f32 %v537, %v541
        %v544 = vadd.f32 %v538, %v542
        %v545 = vadd.f32 %v440, %v543
        %v546 = vadd.f32 %v441, %v544
        %s547 = sld [smem:[#allocation3 + $0xf]]
        %v548 = vstv %s547
        %v549 = vmul.f32 %v548, %v525
        %v550 = vmul.f32 %v548, %v526
        %s551 = sld [smem:[#allocation3 + $0x40]]
        %v552 = vstv %s551
        %v553 = vmul.f32 %v552, %v533
        %v554 = vmul.f32 %v552, %v534
        %v555 = vadd.f32 %v549, %v553
        %v556 = vadd.f32 %v550, %v554
        %v557 = vadd.f32 %v452, %v555
        %v558 = vadd.f32 %v453, %v556
        %s559 = sld [smem:[#allocation3 + $0x10]]
        %v560 = vstv %s559
        %v561 = vmul.f32 %v560, %v525
        %v562 = vmul.f32 %v560, %v526
        %s563 = sld [smem:[#allocation3 + $0x41]]
        %v564 = vstv %s563
        %v565 = vmul.f32 %v564, %v533
        %v566 = vmul.f32 %v564, %v534
        %v567 = vadd.f32 %v561, %v565
        %v568 = vadd.f32 %v562, %v566
        %v569 = vadd.f32 %v464, %v567
        %v570 = vadd.f32 %v465, %v568
        %s571 = sld [smem:[#allocation3 + $0x11]]
        %v572 = vstv %s571
        %v573 = vmul.f32 %v572, %v525
        %v574 = vmul.f32 %v572, %v526
        %s575 = sld [smem:[#allocation3 + $0x42]]
        %v576 = vstv %s575
        %v577 = vmul.f32 %v576, %v533
        %v578 = vmul.f32 %v576, %v534
        %v579 = vadd.f32 %v573, %v577
        %v580 = vadd.f32 %v574, %v578
        %v581 = vadd.f32 %v476, %v579
        %v582 = vadd.f32 %v477, %v580
        %s583 = sld [smem:[#allocation3 + $0x12]]
        %v584 = vstv %s583
        %v585 = vmul.f32 %v584, %v525
        %v586 = vmul.f32 %v584, %v526
        %s587 = sld [smem:[#allocation3 + $0x43]]
        %v588 = vstv %s587
        %v589 = vmul.f32 %v588, %v533
        %v590 = vmul.f32 %v588, %v534
        %v591 = vadd.f32 %v585, %v589
        %v592 = vadd.f32 %v586, %v590
        %v593 = vadd.f32 %v488, %v591
        %v594 = vadd.f32 %v489, %v592
        %s595 = sld [smem:[#allocation3 + $0x13]]
        %v596 = vstv %s595
        %v597 = vmul.f32 %v596, %v525
        %v598 = vmul.f32 %v596, %v526
        %s599 = sld [smem:[#allocation3 + $0x44]]
        %v600 = vstv %s599
        %v601 = vmul.f32 %v600, %v533
        %v602 = vmul.f32 %v600, %v534
        %v603 = vadd.f32 %v597, %v601
        %v604 = vadd.f32 %v598, %v602
        %v605 = vadd.f32 %v500, %v603
        %v606 = vadd.f32 %v501, %v604
        %s607 = sld [smem:[#allocation3 + $0x14]]
        %v608 = vstv %s607
        %v609 = vmul.f32 %v608, %v525
        %v610 = vmul.f32 %v608, %v526
        %s611 = sld [smem:[#allocation3 + $0x45]]
        %v612 = vstv %s611
        %v613 = vmul.f32 %v612, %v533
        %v614 = vmul.f32 %v612, %v534
        %v615 = vadd.f32 %v609, %v613
        %v616 = vadd.f32 %v610, %v614
        %v617 = vadd.f32 %v512, %v615
        %v618 = vadd.f32 %v513, %v616
        %s619 = sld [smem:[#allocation3 + $0x15]]
        %v620 = vstv %s619
        %v621 = vmul.f32 %v620, %v292
        %v622 = vmul.f32 %v620, %v299
        %s623 = sld [smem:[#allocation3 + $0x46]]
        %v624 = vstv %s623
        %v625 = vmul.f32 %v624, %v306
        %v626 = vmul.f32 %v624, %v313
        %v627 = vadd.f32 %v621, %v625
        %v628 = vadd.f32 %v622, %v626
        %v629 = vadd.f32 %v545, %v627
        %v630 = vadd.f32 %v546, %v628
        %s631 = sld [smem:[#allocation3 + $0x16]]
        %v632 = vstv %s631
        %v633 = vmul.f32 %v632, %v292
        %v634 = vmul.f32 %v632, %v299
        %s635 = sld [smem:[#allocation3 + $0x47]]
        %v636 = vstv %s635
        %v637 = vmul.f32 %v636, %v306
        %v638 = vmul.f32 %v636, %v313
        %v639 = vadd.f32 %v633, %v637
        %v640 = vadd.f32 %v634, %v638
        %v641 = vadd.f32 %v557, %v639
        %v642 = vadd.f32 %v558, %v640
        %s643 = sld [smem:[#allocation3 + $0x17]]
        %v644 = vstv %s643
        %v645 = vmul.f32 %v644, %v292
        %v646 = vmul.f32 %v644, %v299
        %s647 = sld [smem:[#allocation3 + $0x48]]
        %v648 = vstv %s647
        %v649 = vmul.f32 %v648, %v306
        %v650 = vmul.f32 %v648, %v313
        %v651 = vadd.f32 %v645, %v649
        %v652 = vadd.f32 %v646, %v650
        %v653 = vadd.f32 %v569, %v651
        %v654 = vadd.f32 %v570, %v652
        %s655 = sld [smem:[#allocation3 + $0x18]]
        %v656 = vstv %s655
        %v657 = vmul.f32 %v656, %v292
        %v658 = vmul.f32 %v656, %v299
        %s659 = sld [smem:[#allocation3 + $0x49]]
        %v660 = vstv %s659
        %v661 = vmul.f32 %v660, %v306
        %v662 = vmul.f32 %v660, %v313
        %v663 = vadd.f32 %v657, %v661
        %v664 = vadd.f32 %v658, %v662
        %v665 = vadd.f32 %v581, %v663
        %v666 = vadd.f32 %v582, %v664
        %s667 = sld [smem:[#allocation3 + $0x19]]
        %v668 = vstv %s667
        %v669 = vmul.f32 %v668, %v292
        %v670 = vmul.f32 %v668, %v299
        %s671 = sld [smem:[#allocation3 + $0x4a]]
        %v672 = vstv %s671
        %v673 = vmul.f32 %v672, %v306
        %v674 = vmul.f32 %v672, %v313
        %v675 = vadd.f32 %v669, %v673
        %v676 = vadd.f32 %v670, %v674
        %v677 = vadd.f32 %v593, %v675
        %v678 = vadd.f32 %v594, %v676
        %s679 = sld [smem:[#allocation3 + $0x1a]]
        %v680 = vstv %s679
        %v681 = vmul.f32 %v680, %v292
        %v682 = vmul.f32 %v680, %v299
        %s683 = sld [smem:[#allocation3 + $0x4b]]
        %v684 = vstv %s683
        %v685 = vmul.f32 %v684, %v306
        %v686 = vmul.f32 %v684, %v313
        %v687 = vadd.f32 %v681, %v685
        %v688 = vadd.f32 %v682, %v686
        %v689 = vadd.f32 %v605, %v687
        %v690 = vadd.f32 %v606, %v688
        %s691 = sld [smem:[#allocation3 + $0x1b]]
        %v692 = vstv %s691
        %v693 = vmul.f32 %v692, %v292
        %v694 = vmul.f32 %v692, %v299
        %s695 = sld [smem:[#allocation3 + $0x4c]]
        %v696 = vstv %s695
        %v697 = vmul.f32 %v696, %v306
        %v698 = vmul.f32 %v696, %v313
        %v699 = vadd.f32 %v693, %v697
        %v700 = vadd.f32 %v694, %v698
        %v701 = vadd.f32 %v617, %v699
        %v702 = vadd.f32 %v618, %v700
        %703 = vrot.lane.b32.xlu0 %v292, 112
        %v704 = vpop.permute.xlu0 %703
        %705 = vrot.lane.b32.xlu0 %v299, 112
        %v706 = vpop.permute.xlu0 %705
        %vm707 = vcmp.lt.s32.totalorder %v323, 112
        %v708 = vsel %vm707, %v704, %v706
        %v709 = vsel %vm707, %v706, %v704
        %v710 = vrot.slane %v314, 4
        %v711 = vrot.slane %v315, 4
        %v714 = vmul.f32 %v708, %v710
        %v715 = vmul.f32 %v709, %v711
        %716 = vrot.lane.b32.xlu0 %v306, 112
        %v717 = vpop.permute.xlu0 %716
        %718 = vrot.lane.b32.xlu0 %v313, 112
        %v719 = vpop.permute.xlu0 %718
        %v720 = vsel %vm707, %v717, %v719
        %v721 = vsel %vm707, %v719, %v717
        %v722 = vmul.f32 %v720, %v710
        %v723 = vmul.f32 %v721, %v711
        %s724 = sld [smem:[#allocation3 + $0x1c]]
        %v725 = vstv %s724
        %v726 = vmul.f32 %v725, %v714
        %v727 = vmul.f32 %v725, %v715
        %s728 = sld [smem:[#allocation3 + $0x4d]]
        %v729 = vstv %s728
        %v730 = vmul.f32 %v729, %v722
        %v731 = vmul.f32 %v729, %v723
        %v732 = vadd.f32 %v726, %v730
        %v733 = vadd.f32 %v727, %v731
        %v734 = vadd.f32 %v629, %v732
        %v735 = vadd.f32 %v630, %v733
        %s736 = sld [smem:[#allocation3 + $0x1d]]
        %v737 = vstv %s736
        %v738 = vmul.f32 %v737, %v714
        %v739 = vmul.f32 %v737, %v715
        %s740 = sld [smem:[#allocation3 + $0x4e]]
        %v741 = vstv %s740
        %v742 = vmul.f32 %v741, %v722
        %v743 = vmul.f32 %v741, %v723
        %v744 = vadd.f32 %v738, %v742
        %v745 = vadd.f32 %v739, %v743
        %v746 = vadd.f32 %v641, %v744
        %v747 = vadd.f32 %v642, %v745
        %s748 = sld [smem:[#allocation3 + $0x1e]]
        %v749 = vstv %s748
        %v750 = vmul.f32 %v749, %v714
        %v751 = vmul.f32 %v749, %v715
        %s752 = sld [smem:[#allocation3 + $0x4f]]
        %v753 = vstv %s752
        %v754 = vmul.f32 %v753, %v722
        %v755 = vmul.f32 %v753, %v723
        %v756 = vadd.f32 %v750, %v754
        %v757 = vadd.f32 %v751, %v755
        %v758 = vadd.f32 %v653, %v756
        %v759 = vadd.f32 %v654, %v757
        %s760 = sld [smem:[#allocation3 + $0x1f]]
        %v761 = vstv %s760
        %v762 = vmul.f32 %v761, %v714
        %v763 = vmul.f32 %v761, %v715
        %s764 = sld [smem:[#allocation3 + $0x50]]
        %v765 = vstv %s764
        %v766 = vmul.f32 %v765, %v722
        %v767 = vmul.f32 %v765, %v723
        %v768 = vadd.f32 %v762, %v766
        %v769 = vadd.f32 %v763, %v767
        %v770 = vadd.f32 %v665, %v768
        %v771 = vadd.f32 %v666, %v769
        %s772 = sld [smem:[#allocation3 + $0x20]]
        %v773 = vstv %s772
        %v774 = vmul.f32 %v773, %v714
        %v775 = vmul.f32 %v773, %v715
        %s776 = sld [smem:[#allocation3 + $0x51]]
        %v777 = vstv %s776
        %v778 = vmul.f32 %v777, %v722
        %v779 = vmul.f32 %v777, %v723
        %v780 = vadd.f32 %v774, %v778
        %v781 = vadd.f32 %v775, %v779
        %v782 = vadd.f32 %v677, %v780
        %v783 = vadd.f32 %v678, %v781
        %s784 = sld [smem:[#allocation3 + $0x21]]
        %v785 = vstv %s784
        %v786 = vmul.f32 %v785, %v714
        %v787 = vmul.f32 %v785, %v715
        %s788 = sld [smem:[#allocation3 + $0x52]]
        %v789 = vstv %s788
        %v790 = vmul.f32 %v789, %v722
        %v791 = vmul.f32 %v789, %v723
        %v792 = vadd.f32 %v786, %v790
        %v793 = vadd.f32 %v787, %v791
        %v794 = vadd.f32 %v689, %v792
        %v795 = vadd.f32 %v690, %v793
        %s796 = sld [smem:[#allocation3 + $0x22]]
        %v797 = vstv %s796
        %v798 = vmul.f32 %v797, %v714
        %v799 = vmul.f32 %v797, %v715
        %s800 = sld [smem:[#allocation3 + $0x53]]
        %v801 = vstv %s800
        %v802 = vmul.f32 %v801, %v722
        %v803 = vmul.f32 %v801, %v723
        %v804 = vadd.f32 %v798, %v802
        %v805 = vadd.f32 %v799, %v803
        %v806 = vadd.f32 %v701, %v804
        %v807 = vadd.f32 %v702, %v805
        %808 = vrot.lane.b32.xlu0 %v292, 96
        %v809 = vpop.permute.xlu0 %808
        %810 = vrot.lane.b32.xlu0 %v299, 96
        %v811 = vpop.permute.xlu0 %810
        %vm812 = vcmp.lt.s32.totalorder %v323, 96
        %v813 = vsel %vm812, %v809, %v811
        %v814 = vsel %vm812, %v811, %v809
        %v815 = vrot.slane %v314, 5
        %v816 = vrot.slane %v315, 5
        %v819 = vmul.f32 %v813, %v815
        %v820 = vmul.f32 %v814, %v816
        %821 = vrot.lane.b32.xlu0 %v306, 96
        %v822 = vpop.permute.xlu0 %821
        %823 = vrot.lane.b32.xlu0 %v313, 96
        %v824 = vpop.permute.xlu0 %823
        %v825 = vsel %vm812, %v822, %v824
        %v826 = vsel %vm812, %v824, %v822
        %v827 = vmul.f32 %v825, %v815
        %v828 = vmul.f32 %v826, %v816
        %s829 = sld [smem:[#allocation3 + $0x23]]
        %v830 = vstv %s829
        %v831 = vmul.f32 %v830, %v819
        %v832 = vmul.f32 %v830, %v820
        %s833 = sld [smem:[#allocation3 + $0x54]]
        %v834 = vstv %s833
        %v835 = vmul.f32 %v834, %v827
        %v836 = vmul.f32 %v834, %v828
        %v837 = vadd.f32 %v831, %v835
        %v838 = vadd.f32 %v832, %v836
        %v839 = vadd.f32 %v734, %v837
        %v840 = vadd.f32 %v735, %v838
        %s841 = sld [smem:[#allocation3 + $0x24]]
        %v842 = vstv %s841
        %v843 = vmul.f32 %v842, %v819
        %v844 = vmul.f32 %v842, %v820
        %s845 = sld [smem:[#allocation3 + $0x55]]
        %v846 = vstv %s845
        %v847 = vmul.f32 %v846, %v827
        %v848 = vmul.f32 %v846, %v828
        %v849 = vadd.f32 %v843, %v847
        %v850 = vadd.f32 %v844, %v848
        %v851 = vadd.f32 %v746, %v849
        %v852 = vadd.f32 %v747, %v850
        %s853 = sld [smem:[#allocation3 + $0x25]]
        %v854 = vstv %s853
        %v855 = vmul.f32 %v854, %v819
        %v856 = vmul.f32 %v854, %v820
        %s857 = sld [smem:[#allocation3 + $0x56]]
        %v858 = vstv %s857
        %v859 = vmul.f32 %v858, %v827
        %v860 = vmul.f32 %v858, %v828
        %v861 = vadd.f32 %v855, %v859
        %v862 = vadd.f32 %v856, %v860
        %v863 = vadd.f32 %v758, %v861
        %v864 = vadd.f32 %v759, %v862
        %s865 = sld [smem:[#allocation3 + $0x26]]
        %v866 = vstv %s865
        %v867 = vmul.f32 %v866, %v819
        %v868 = vmul.f32 %v866, %v820
        %s869 = sld [smem:[#allocation3 + $0x57]]
        %v870 = vstv %s869
        %v871 = vmul.f32 %v870, %v827
        %v872 = vmul.f32 %v870, %v828
        %v873 = vadd.f32 %v867, %v871
        %v874 = vadd.f32 %v868, %v872
        %v875 = vadd.f32 %v770, %v873
        %v876 = vadd.f32 %v771, %v874
        %s877 = sld [smem:[#allocation3 + $0x27]]
        %v878 = vstv %s877
        %v879 = vmul.f32 %v878, %v819
        %v880 = vmul.f32 %v878, %v820
        %s881 = sld [smem:[#allocation3 + $0x58]]
        %v882 = vstv %s881
        %v883 = vmul.f32 %v882, %v827
        %v884 = vmul.f32 %v882, %v828
        %v885 = vadd.f32 %v879, %v883
        %v886 = vadd.f32 %v880, %v884
        %v887 = vadd.f32 %v782, %v885
        %v888 = vadd.f32 %v783, %v886
        %s889 = sld [smem:[#allocation3 + $0x28]]
        %v890 = vstv %s889
        %v891 = vmul.f32 %v890, %v819
        %v892 = vmul.f32 %v890, %v820
        %s893 = sld [smem:[#allocation3 + $0x59]]
        %v894 = vstv %s893
        %v895 = vmul.f32 %v894, %v827
        %v896 = vmul.f32 %v894, %v828
        %v897 = vadd.f32 %v891, %v895
        %v898 = vadd.f32 %v892, %v896
        %v899 = vadd.f32 %v794, %v897
        %v900 = vadd.f32 %v795, %v898
        %s901 = sld [smem:[#allocation3 + $0x29]]
        %v902 = vstv %s901
        %v903 = vmul.f32 %v902, %v819
        %v904 = vmul.f32 %v902, %v820
        %s905 = sld [smem:[#allocation3 + $0x5a]]
        %v906 = vstv %s905
        %v907 = vmul.f32 %v906, %v827
        %v908 = vmul.f32 %v906, %v828
        %v909 = vadd.f32 %v903, %v907
        %v910 = vadd.f32 %v904, %v908
        %v911 = vadd.f32 %v806, %v909
        %v912 = vadd.f32 %v807, %v910
        %913 = vrot.lane.b32.xlu0 %v292, 80
        %v914 = vpop.permute.xlu0 %913
        %915 = vrot.lane.b32.xlu0 %v299, 80
        %v916 = vpop.permute.xlu0 %915
        %vm917 = vcmp.lt.s32.totalorder %v323, 80
        %v918 = vsel %vm917, %v914, %v916
        %v919 = vsel %vm917, %v916, %v914
        %v920 = vrot.slane %v314, 6
        %v921 = vrot.slane %v315, 6
        %v924 = vmul.f32 %v918, %v920
        %v925 = vmul.f32 %v919, %v921
        %926 = vrot.lane.b32.xlu0 %v306, 80
        %v927 = vpop.permute.xlu0 %926
        %928 = vrot.lane.b32.xlu0 %v313, 80
        %v929 = vpop.permute.xlu0 %928
        %v930 = vsel %vm917, %v927, %v929
        %v931 = vsel %vm917, %v929, %v927
        %v932 = vmul.f32 %v930, %v920
        %v933 = vmul.f32 %v931, %v921
        %s934 = sld [smem:[#allocation3 + $0x2a]]
        %v935 = vstv %s934
        %v936 = vmul.f32 %v935, %v924
        %v937 = vmul.f32 %v935, %v925
        %s938 = sld [smem:[#allocation3 + $0x5b]]
        %v939 = vstv %s938
        %v940 = vmul.f32 %v939, %v932
        %v941 = vmul.f32 %v939, %v933
        %v942 = vadd.f32 %v936, %v940
        %v943 = vadd.f32 %v937, %v941
        %v944 = vadd.f32 %v839, %v942
        %v945 = vadd.f32 %v840, %v943
        %s946 = sld [smem:[#allocation3 + $0x2b]]
        %v947 = vstv %s946
        %v948 = vmul.f32 %v947, %v924
        %v949 = vmul.f32 %v947, %v925
        %s950 = sld [smem:[#allocation3 + $0x5c]]
        %v951 = vstv %s950
        %v952 = vmul.f32 %v951, %v932
        %v953 = vmul.f32 %v951, %v933
        %v954 = vadd.f32 %v948, %v952
        %v955 = vadd.f32 %v949, %v953
        %v956 = vadd.f32 %v851, %v954
        %v957 = vadd.f32 %v852, %v955
        %s958 = sld [smem:[#allocation3 + $0x2c]]
        %v959 = vstv %s958
        %v960 = vmul.f32 %v959, %v924
        %v961 = vmul.f32 %v959, %v925
        %s962 = sld [smem:[#allocation3 + $0x5d]]
        %v963 = vstv %s962
        %v964 = vmul.f32 %v963, %v932
        %v965 = vmul.f32 %v963, %v933
        %v966 = vadd.f32 %v960, %v964
        %v967 = vadd.f32 %v961, %v965
        %v968 = vadd.f32 %v863, %v966
        %v969 = vadd.f32 %v864, %v967
        %s970 = sld [smem:[#allocation3 + $0x2d]]
        %v971 = vstv %s970
        %v972 = vmul.f32 %v971, %v924
        %v973 = vmul.f32 %v971, %v925
        %s974 = sld [smem:[#allocation3 + $0x5e]]
        %v975 = vstv %s974
        %v976 = vmul.f32 %v975, %v932
        %v977 = vmul.f32 %v975, %v933
        %v978 = vadd.f32 %v972, %v976
        %v979 = vadd.f32 %v973, %v977
        %v980 = vadd.f32 %v875, %v978
        %v981 = vadd.f32 %v876, %v979
        %s982 = sld [smem:[#allocation3 + $0x2e]]
        %v983 = vstv %s982
        %v984 = vmul.f32 %v983, %v924
        %v985 = vmul.f32 %v983, %v925
        %s986 = sld [smem:[#allocation3 + $0x5f]]
        %v987 = vstv %s986
        %v988 = vmul.f32 %v987, %v932
        %v989 = vmul.f32 %v987, %v933
        %v990 = vadd.f32 %v984, %v988
        %v991 = vadd.f32 %v985, %v989
        %v992 = vadd.f32 %v887, %v990
        %v993 = vadd.f32 %v888, %v991
        %s994 = sld [smem:[#allocation3 + $0x2f]]
        %v995 = vstv %s994
        %v996 = vmul.f32 %v995, %v924
        %v997 = vmul.f32 %v995, %v925
        %s998 = sld [smem:[#allocation3 + $0x60]]
        %v999 = vstv %s998
        %v1000 = vmul.f32 %v999, %v932
        %v1001 = vmul.f32 %v999, %v933
        %v1002 = vadd.f32 %v996, %v1000
        %v1003 = vadd.f32 %v997, %v1001
        %v1004 = vadd.f32 %v899, %v1002
        %v1005 = vadd.f32 %v900, %v1003
        %s1006 = sld [smem:[#allocation3 + $0x30]]
        %v1007 = vstv %s1006
        %v1008 = vmul.f32 %v1007, %v924
        %v1009 = vmul.f32 %v1007, %v925
        %s1010 = sld [smem:[#allocation3 + $0x61]]
        %v1011 = vstv %s1010
        %v1012 = vmul.f32 %v1011, %v932
        %v1013 = vmul.f32 %v1011, %v933
        %v1014 = vadd.f32 %v1008, %v1012
        %v1015 = vadd.f32 %v1009, %v1013
        %v1016 = vadd.f32 %v911, %v1014
        %v1017 = vadd.f32 %v912, %v1015
        %s1018 = sld [smem:[#allocation2]]
        %v1019 = vstv %s1018
        %1020 = vrot.lane.b32.xlu0 %v944, 3
        %v1021 = vpop.permute.xlu0 %1020
        %1022 = vrot.lane.b32.xlu0 %v945, 3
        %v1023 = vpop.permute.xlu0 %1022
        %vm1024 = vcmp.lt.s32.totalorder %v323, 3
        %v1025 = vsel %vm1024, %v1021, %v1023
        %v1026 = vsel %vm1024, %v1023, %v1021
        %v1027 = vmul.f32 %v1026, %v316
        %v1028 = vmul.f32 %v1025, %v317
        %v1029 = vadd.f32 %v1019, %v1027
        %v1030 = vadd.f32 %v1019, %v1028
        %1031 = vrot.lane.b32.xlu0 %v956, 2
        %v1032 = vpop.permute.xlu0 %1031
        %1033 = vrot.lane.b32.xlu0 %v957, 2
        %v1034 = vpop.permute.xlu0 %1033
        %vm1035 = vcmp.lt.s32.totalorder %v323, 2
        %v1036 = vsel %vm1035, %v1032, %v1034
        %v1037 = vsel %vm1035, %v1034, %v1032
        %v1040 = vrot.slane %v316, 1
        %v1041 = vrot.slane %v317, 1
        %v1044 = vmul.f32 %v1037, %v1040
        %v1045 = vmul.f32 %v1036, %v1041
        %v1046 = vadd.f32 %v1029, %v1044
        %v1047 = vadd.f32 %v1030, %v1045
        %1048 = vrot.lane.b32.xlu0 %v968, 1
        %v1049 = vpop.permute.xlu0 %1048
        %1050 = vrot.lane.b32.xlu0 %v969, 1
        %v1051 = vpop.permute.xlu0 %1050
        %vm1052 = vcmp.lt.s32.totalorder %v323, 1
        %v1053 = vsel %vm1052, %v1049, %v1051
        %v1054 = vsel %vm1052, %v1051, %v1049
        %v1055 = vrot.slane %v316, 2
        %v1056 = vrot.slane %v317, 2
        %v1059 = vmul.f32 %v1054, %v1055
        %v1060 = vmul.f32 %v1053, %v1056
        %v1061 = vadd.f32 %v1046, %v1059
        %v1062 = vadd.f32 %v1047, %v1060
        %v1063 = vadd.f32 %v1061, %v980
        %v1064 = vadd.f32 %v1062, %v981
        %1065 = vrot.lane.b32.xlu0 %v992, 127
        %v1066 = vpop.permute.xlu0 %1065
        %1067 = vrot.lane.b32.xlu0 %v993, 127
        %v1068 = vpop.permute.xlu0 %1067
        %vm1069 = vcmp.lt.s32.totalorder %v323, 127
        %v1070 = vsel %vm1069, %v1066, %v1068
        %v1071 = vsel %vm1069, %v1068, %v1066
        %v1072 = vrot.slane %v316, 4
        %v1073 = vrot.slane %v317, 4
        %v1076 = vmul.f32 %v1070, %v1072
        %v1077 = vmul.f32 %v1071, %v1073
        %v1078 = vadd.f32 %v1063, %v1076
        %v1079 = vadd.f32 %v1064, %v1077
        %1080 = vrot.lane.b32.xlu0 %v1004, 126
        %v1081 = vpop.permute.xlu0 %1080
        %1082 = vrot.lane.b32.xlu0 %v1005, 126
        %v1083 = vpop.permute.xlu0 %1082
        %vm1084 = vcmp.lt.s32.totalorder %v323, 126
        %v1085 = vsel %vm1084, %v1081, %v1083
        %v1086 = vsel %vm1084, %v1083, %v1081
        %v1087 = vrot.slane %v316, 5
        %v1088 = vrot.slane %v317, 5
        %v1091 = vmul.f32 %v1085, %v1087
        %v1092 = vmul.f32 %v1086, %v1088
        %v1093 = vadd.f32 %v1078, %v1091
        %v1094 = vadd.f32 %v1079, %v1092
        %1095 = vrot.lane.b32.xlu0 %v1016, 125
        %v1096 = vpop.permute.xlu0 %1095
        %1097 = vrot.lane.b32.xlu0 %v1017, 125
        %v1098 = vpop.permute.xlu0 %1097
        %vm1099 = vcmp.lt.s32.totalorder %v323, 125
        %v1100 = vsel %vm1099, %v1096, %v1098
        %v1101 = vsel %vm1099, %v1098, %v1096
        %v1102 = vrot.slane %v316, 6
        %v1103 = vrot.slane %v317, 6
        %v1106 = vmul.f32 %v1100, %v1102
        %v1107 = vmul.f32 %v1101, %v1103
        %v1108 = vadd.f32 %v1093, %v1106
        %v1109 = vadd.f32 %v1094, %v1107
        %v1110 = vxor.u32 %v1108, 2147483648
        %v1111 = vxor.u32 %v1109, 2147483648
        %v1112 = vmul.f32 %v1110, 1.442695
        %v1113 = vpow.pop %v1112
        %v1114 = vmul.f32 %v1111, 1.442695
        %v1115 = vpow.pop %v1114
        %v1116 = vadd.f32 %v1113, 1.0
        %v1117 = vadd.f32 %v1115, 1.0
        %v1118 = vrcp.pop %v1116
        %v1119 = vmul.f32 1.0, %v1118
        %v1120 = vrcp.pop %v1117
        %v1121 = vmul.f32 1.0, %v1120
        %v1122 = vlaneseq
        %v1123 = vshrl.u32 %v1122, 7
        %v1124 = vsub.s32 0, %v1123
        %v1125 = vrot.slane %v1119, %v1124
        %v1126 = vlaneseq
        %v1127 = vshrl.u32 %v1126, 7
        %v1128 = vsub.s32 0, %v1127
        %v1129 = vrot.slane %v1121, %v1128
        %v1132 = vcombine.low %v1125, %v1129
        %v1134 = vmul.f32 %v281, %v1132
        %1135 = vst [vmem:[%s280] sm:$0xff] %v1134
        %s1136 = sand.u32 %s143, 1
        %s1137 = scalar_lea.sflag [#allocation5], %s1136
        %s1138 = sand.u32 %s143, 1
        %s1139 = smul.addr %s1138, 8
        %s1140 = scalar_lea.vmem [#allocation11], %s1139
        // Predicated region
        $region57: #{tpu_custom_call.1} parent=39 // pred_check
          %p1141 = pneg %p153
        $region58: #{tpu_custom_call.1} parent=39 // pred_check_branch
          %1143 = sbr.rel (%p1141) target = $region60
        $region59: #{tpu_custom_call.1} parent=39 // pred_region
          %s1145 = ssub.s32 128, 128
          %1146 = vsyncadd %s1137, %s1145
          %s1147 = smul.addr %s25, 2
          %s1148 = smul.addr %s1147, 64
          %s1149 = scalar_lea.hbm %s5, %s1148
          %s1151 = sshll.u32 %s1140, 4
          %s1152 = int_to_ptr.vmem [resolvable:$true] %s1151
          %1154 = dma.vmem_to_hbm [thread:$0]  %s1152, 128, %s1149, %s1137
        $region60: #{tpu_custom_call.1} parent=39 // pred_fallthru
          _
      $region40: #{tpu_custom_call.1} parent=5 // pred_fallthru
        _
      %p1155 = scmp.le.s32.totalorder 2, %s20
      // Predicated region
      $region61: #{tpu_custom_call.1} parent=5 // pred_check
        %p1156 = pneg %p1155
      $region62: #{tpu_custom_call.1} parent=5 // pred_check_branch
        %1158 = sbr.rel (%p1156) target = $region64
      $region63: #{tpu_custom_call.1} parent=5 // pred_region
        %s1159 = ssub.s32 %s20, 2
        // Predicated region
        $region65: #{tpu_custom_call.1} parent=63 // pred_check
          %p1160 = pneg %p159
        $region66: #{tpu_custom_call.1} parent=63 // pred_check_branch
          %1162 = sbr.rel (%p1160) target = $region68
        $region67: #{tpu_custom_call.1} parent=63 // pred_region
          %s1163 = sand.u32 %s144, 1
          %s1164 = scalar_lea.sflag [#allocation5], %s1163
          %s1165 = sand.u32 %s144, 1
          %s1166 = smul.addr %s1165, 8
          %s1167 = scalar_lea.vmem [#allocation11], %s1166
          %1168 = dma.done %s1164, 128
        $region68: #{tpu_custom_call.1} parent=63 // pred_fallthru
          _
      $region64: #{tpu_custom_call.1} parent=5 // pred_fallthru
        _
    $region6: #{tpu_custom_call.1} parent=1 // loop_footer
      %s24 = sadd.s32 1, %s20
    $region7: #{tpu_custom_call.1} parent=1 // loop_footer_branch
      %19 = sbr.rel target = $region3
    $region8: #{tpu_custom_call.1} parent=1 // loop_exit
      _
    %1169 = vsyncpa [#allocation4], 1
    %s1170 = scalar_lea.sflag [#allocation4], 1
    %1171 = vsyncpa %s1170, 1
    %1172 = vsyncpa [#allocation9], 1
    %1173 = vsyncpa [#allocation5], 1
    %s1174 = scalar_lea.sflag [#allocation5], 1
    %1175 = vsyncpa %s1174, 1
    %1176 = vsyncpa [#allocation6], 1
    %s1177 = scalar_lea.sflag [#allocation6], 1
    %1178 = vsyncpa %s1177, 1

</llo_original>
